<compile_context>
chip_gen: v7x
topology: tpu7x:2x2x1
jax: 0.10.0
libtpu: 0.0.40
codegen_flags: <defaults>
</compile_context>

<pallas_src>
import functools

import jax
import jax.numpy as jnp
from jax import lax
from jax.experimental import pallas as pl
from jax.experimental.pallas import tpu as pltpu


# ------------------------------- Pallas kernel -------------------------------

def _vq_kernel(x_ref, e_ref, et_ref, esq_ref, q_ref, idx_ref, err_ref,
               *, hw, e_chunk, dist_bf16):
    # x_ref:   (1, D, ts)   activation slab, channels on sublanes, HW on lanes
    # e_ref:   (E, D)       codebook (resident, single-buffered)
    # et_ref:  (D, E)       pre-transposed codebook for the quantize matmul
    # esq_ref: (E, 1)       precomputed ||e||^2
    # q_ref:   (1, D, ts)   quantized activations (same NCHW-flat layout)
    # idx_ref: (1, 1, ts)   nearest-codebook index per spatial position
    # err_ref: (1, 1, 1, 1) per-tile sum of squared (quantized - x)
    x = x_ref[0]                                        # (D, ts) f32
    d_dim, ts = x.shape
    num_e = e_ref.shape[0]
    n_chunks = num_e // e_chunk
    x_mm = x.astype(jnp.bfloat16) if dist_bf16 else x

    def _ds(off, size):
        if isinstance(off, int):
            return pl.ds(off, size)
        return pl.ds(pl.multiple_of(off, size), size)

    # ---- pass 1: chunked running (min distance, argmin) over the codebook ---
    # score[e, t] = ||emb_e||^2 - 2 <emb_e, x_t>   (||x_t||^2 is argmin-invariant)
    def dist_step(c, carry):
        best_s, best_i = carry
        off = c * e_chunk
        e_c = e_ref[_ds(off, e_chunk), :]                          # (ck, D)
        esq_c = esq_ref[_ds(off, e_chunk), :]                      # (ck, 1)
        if dist_bf16:
            e_c = e_c.astype(jnp.bfloat16)
        cross = jnp.dot(e_c, x_mm, preferred_element_type=jnp.float32)  # MXU
        s = esq_c - 2.0 * cross                                    # (ck, ts)
        rid = off + lax.broadcasted_iota(jnp.int32, (e_chunk, ts), 0)
        c_min = jnp.min(s, axis=0, keepdims=True)                  # (1, ts)
        c_arg = jnp.min(jnp.where(s == c_min, rid, num_e),
                        axis=0, keepdims=True)                     # (1, ts)
        take = c_min < best_s            # strict '<': earlier chunk wins ties
        return jnp.minimum(c_min, best_s), jnp.where(take, c_arg, best_i)

    carry = (jnp.full((1, ts), jnp.inf, jnp.float32),
             jnp.zeros((1, ts), jnp.int32))
    if n_chunks <= 8:                    # short, fixed trip count: unroll
        for c in range(n_chunks):
            carry = dist_step(c, carry)
    else:
        carry = lax.fori_loop(0, n_chunks, dist_step, carry)
    idx = carry[1]                                                 # (1, ts)

    # ---- pass 2: quantized = codebook^T @ one_hot(idx), chunked (exact) -----
    def q_step(c, acc):
        off = c * e_chunk
        et_c = et_ref[:, _ds(off, e_chunk)]                        # (D, ck)
        rid = off + lax.broadcasted_iota(jnp.int32, (e_chunk, ts), 0)
        enc = (rid == idx).astype(jnp.float32)                     # (ck, ts) 0/1
        return acc + jnp.dot(et_c, enc, preferred_element_type=jnp.float32)

    q = jnp.zeros((d_dim, ts), jnp.float32)
    if n_chunks <= 8:
        for c in range(n_chunks):
            q = q_step(c, q)
    else:
        q = lax.fori_loop(0, n_chunks, q_step, q)

    # ---- outputs -------------------------------------------------------------
    col = pl.program_id(1) * ts + lax.broadcasted_iota(jnp.int32, (1, ts), 1)
    valid = col < hw                     # masks the ragged last spatial tile
    q_ref[...] = q[None]
    idx_ref[...] = idx[None]
    d = jnp.where(valid, q - x, 0.0)     # select: garbage/NaN pad lanes ignored
    err_ref[...] = jnp.sum(d * d, keepdims=True)[None, None]


# ------------------------------ tile selection --------------------------------

def _pick_ts(hw, n, d, *, max_ts=1024, min_grid=4, tile_budget=24 << 20):
    """Lane-dense spatial tile: largest tile within the VMEM budget, shrunk only
    as far as needed to expose >= min_grid grid steps (2 TCs on v7x)."""
    if hw % 128 != 0 and hw <= max_ts:
        return hw                        # full-extent lane dim (legal block)
    cands = [t for t in range(min(max_ts, (hw // 128) * 128), 0, -128)
             if (4 * d * t + 2 * 8 * t) * 4 <= tile_budget]
    if not cands:
        cands = [128]
    div = [t for t in cands if hw % t == 0]
    for pool in (div, cands):            # prefer tiles that divide HW
        for t in pool:                   # descending: largest first
            if n * pl.cdiv(hw, t) >= min_grid:
                return t
    return (div or cands)[0]             # tiny problem: fewest steps wins


def _pick_e_chunk(num_e, *, max_chunk=256):
    """Codebook chunk for the in-kernel sweep (bounds (E, ts) intermediates)."""
    if num_e <= max_chunk:
        return num_e
    for c in (256, 128):                 # sublane/lane aligned chunk sizes
        if num_e % c == 0:
            return c
    return num_e                         # odd codebook size: single sweep


# --------------------------------- wrapper ------------------------------------

def quantizer_forward(z_e_x, emb_w, beta, *, max_ts=1024, dist_bf16=None):
    """Quantizer.forward: returns (loss, z_q_x, perplexity, e_i_stars_idx)."""
    N, D, H, W = z_e_x.shape
    E, D2 = emb_w.shape
    assert D == D2, (D, D2)
    HW = H * W
    M = N * HW

    # NCHW stays NCHW: (N, C, H, W) -> (N, C, H*W) is a free contiguous reshape.
    x = z_e_x.reshape(N, D, HW).astype(jnp.float32)
    e = emb_w.astype(jnp.float32)                      # (E, D) distance matmul
    e_t = e.T                                          # (D, E) quantize matmul
    esq = jnp.sum(e * e, axis=-1, keepdims=True)       # (E, 1) precomputed ||e||^2

    ts = _pick_ts(HW, N, D, max_ts=max_ts)
    n_s = pl.cdiv(HW, ts)
    e_chunk = _pick_e_chunk(E)
    if dist_bf16 is None:
        dist_bf16 = E >= 512     # bf16 MXU only once the codebook sweep dominates

    # Explicit VMEM budget (v7x: 64 MiB physical / 32 MiB default scoped).
    est = (4 * D * ts                       # x + q tiles, double-buffered
           + 2 * 8 * ts                     # idx tile (sublane padded)
           + 2 * (2 * E * D + 128 * E)      # e, e_t, esq (conservative x2)
           + 3 * e_chunk * ts + 3 * D * ts  # in-kernel intermediates
           ) * 4
    vmem_limit = int(min(64 << 20, max(32 << 20, 2 * est)))

    kernel = functools.partial(_vq_kernel, hw=HW, e_chunk=e_chunk,
                               dist_bf16=bool(dist_bf16))

    def build(single_buffer_codebook):
        const_kw = ({"pipeline_mode": pl.Buffered(1)}
                    if single_buffer_codebook else {})
        return pl.pallas_call(
            kernel,
            grid=(N, n_s),
            in_specs=[
                pl.BlockSpec((1, D, ts), lambda n, s: (n, 0, s)),
                pl.BlockSpec((E, D), lambda n, s: (0, 0), **const_kw),
                pl.BlockSpec((D, E), lambda n, s: (0, 0), **const_kw),
                pl.BlockSpec((E, 1), lambda n, s: (0, 0), **const_kw),
            ],
            out_specs=(
                pl.BlockSpec((1, D, ts), lambda n, s: (n, 0, s)),
                pl.BlockSpec((1, 1, ts), lambda n, s: (n, 0, s)),
                pl.BlockSpec((1, 1, 1, 1), lambda n, s: (n, s, 0, 0)),
            ),
            out_shape=(
                jax.ShapeDtypeStruct((N, D, HW), jnp.float32),
                jax.ShapeDtypeStruct((N, 1, HW), jnp.int32),
                jax.ShapeDtypeStruct((N, n_s, 1, 1), jnp.float32),
            ),
            compiler_params=pltpu.CompilerParams(
                dimension_semantics=("parallel", "parallel"),
                vmem_limit_bytes=vmem_limit),
        )

    try:
        q, idx, err = build(True)(x, e, e_t, esq)
    except Exception:  # pragma: no cover - graceful fallback if Buffered(1) unsupported
        q, idx, err = build(False)(x, e, e_t, esq)

    z_q_x = q.reshape(N, D, H, W).astype(z_e_x.dtype)          # already NCHW
    idx_flat = idx[:, 0, :].reshape(M)                          # (n, h, w) order
    counts = jnp.zeros((E,), jnp.float32).at[idx_flat].add(1.0)

    mse = jnp.sum(err) / (M * D)
    # loss_q and Beta*loss_e have identical forward values (detach is grad-only).
    loss = (1.0 + beta) * mse
    probs = counts / M
    perplexity = jnp.exp(-jnp.sum(probs * jnp.log(probs + 1e-10)))
    # Straight-through estimator x + (q - x).detach() has forward value q.
    return loss, z_q_x, perplexity, idx_flat.reshape(M, 1)


# ----------------------------- pure-JAX reference -----------------------------

def ref_forward(z_e_x, emb_w, beta):
    N, D, H, W = z_e_x.shape
    x = jnp.transpose(z_e_x, (0, 2, 3, 1)).astype(jnp.float32)
    x_flat = x.reshape(-1, D)
    d = (jnp.sum(x_flat ** 2, axis=1, keepdims=True)
         + jnp.sum(emb_w ** 2, axis=1)
         - 2.0 * jnp.dot(x_flat, emb_w.T, precision=lax.Precision.HIGHEST))
    idx = jnp.argmin(d, axis=1)
    q = jnp.take(emb_w, idx, axis=0).reshape(x.shape)
    mse = jnp.mean((q - x) ** 2)
    loss = (1.0 + beta) * mse
    z_q_x = jnp.transpose(q, (0, 3, 1, 2))
    enc = jax.nn.one_hot(idx, emb_w.shape[0], dtype=jnp.float32)
    probs = jnp.mean(enc, axis=0)
    perplexity = jnp.exp(-jnp.sum(probs * jnp.log(probs + 1e-10)))
    return loss, z_q_x, perplexity, idx.reshape(-1, 1).astype(jnp.int32)


# ------------------------------------ main -------------------------------------

if __name__ == "__main__":
    key = jax.random.PRNGKey(0)
    k_x, k_e = jax.random.split(key)

    N, emb_dim, H, W = 2, 32, 16, 16
    num_embs, beta = 64, 0.25

    z_e_x = jax.random.normal(k_x, (N, emb_dim, H, W), jnp.float32)
    emb_w = jax.random.uniform(k_e, (num_embs, emb_dim), jnp.float32,
                               -1.0 / num_embs, 1.0 / num_embs)

    loss, z_q_x, perp, idx = quantizer_forward(z_e_x, emb_w, beta)
    (loss, z_q_x, perp, idx) = jax.block_until_ready((loss, z_q_x, perp, idx))

    rl, rq, rp, ri = ref_forward(z_e_x, emb_w, beta)

    assert z_q_x.shape == (N, emb_dim, H, W), z_q_x.shape
    assert idx.shape == (N * H * W, 1), idx.shape
    assert jnp.array_equal(idx[:, 0], ri[:, 0]), "argmin indices mismatch"
    assert jnp.allclose(z_q_x, rq, rtol=1e-4, atol=1e-5), \
        float(jnp.max(jnp.abs(z_q_x - rq)))
    assert jnp.allclose(loss, rl, rtol=1e-5, atol=1e-5), (float(loss), float(rl))
    assert jnp.allclose(perp, rp, rtol=1e-4, atol=1e-4), (float(perp), float(rp))

    print("KERNEL_OK")
</pallas_src>

<mosaic_0001>
module attributes {stable_mosaic.version = 11 : i64} {
  func.func @_vq_kernel(%arg0: i32, %arg1: i32, %arg2: memref<1x32x128xf32, #tpu.memory_space<vmem>>, %arg3: memref<64x32xf32, #tpu.memory_space<vmem>>, %arg4: memref<32x64xf32, #tpu.memory_space<vmem>>, %arg5: memref<64x1xf32, #tpu.memory_space<vmem>>, %arg6: memref<1x32x128xf32, #tpu.memory_space<vmem>>, %arg7: memref<1x1x128xi32, #tpu.memory_space<vmem>>, %arg8: memref<1x1x1x1xf32, #tpu.memory_space<vmem>>) attributes {dimension_semantics = [#tpu.dimension_semantics<parallel>, #tpu.dimension_semantics<parallel>], iteration_bounds = array<i64: 2, 2>, scalar_prefetch = 0 : i64, scratch_operands = 0 : i64, tpu.core_type = #tpu.core_type<tc>, window_params = [{transform_indices = @transform_0, window_bounds = array<i64: 1, 32, 128>}, {pipeline_mode = #tpu.pipeline_mode<synchronous>, transform_indices = @transform_1, window_bounds = array<i64: 64, 32>}, {pipeline_mode = #tpu.pipeline_mode<synchronous>, transform_indices = @transform_2, window_bounds = array<i64: 32, 64>}, {pipeline_mode = #tpu.pipeline_mode<synchronous>, transform_indices = @transform_3, window_bounds = array<i64: 64, 1>}, {transform_indices = @transform_4, window_bounds = array<i64: 1, 32, 128>}, {transform_indices = @transform_5, window_bounds = array<i64: 1, 1, 128>}, {transform_indices = @transform_6, window_bounds = array<i64: 1, 1, 1, 1>}]} {
    %c0 = arith.constant 0 : index
    %c0_0 = arith.constant 0 : index
    %c0_1 = arith.constant 0 : index
    %0 = vector.load %arg2[%c0, %c0_0, %c0_1] : memref<1x32x128xf32, #tpu.memory_space<vmem>>, vector<1x32x128xf32>
    %1 = vector.shape_cast %0 : vector<1x32x128xf32> to vector<32x128xf32>
    %cst = arith.constant 0x7F800000 : f32
    %2 = vector.broadcast %cst : f32 to vector<1x128xf32>
    %c0_i32 = arith.constant 0 : i32
    %3 = vector.broadcast %c0_i32 : i32 to vector<1x128xi32>
    %c0_2 = arith.constant 0 : index
    %c0_3 = arith.constant 0 : index
    %4 = vector.load %arg3[%c0_2, %c0_3] : memref<64x32xf32, #tpu.memory_space<vmem>>, vector<64x32xf32>
    %c0_4 = arith.constant 0 : index
    %c0_5 = arith.constant 0 : index
    %5 = vector.load %arg5[%c0_4, %c0_5] : memref<64x1xf32, #tpu.memory_space<vmem>>, vector<64x1xf32>
    %cst_6 = arith.constant dense<0.000000e+00> : vector<64x128xf32>
    %6 = tpu.matmul %4, %1, %cst_6 {dimension_numbers = #tpu.dot_dimension_numbers<[1], [0], [0], [1], [0, 0, 1, 1], [], []>} : vector<64x32xf32>, vector<32x128xf32>, vector<64x128xf32> -> vector<64x128xf32>
    %cst_7 = arith.constant 2.000000e+00 : f32
    %7 = vector.broadcast %cst_7 : f32 to vector<64x128xf32>
    %8 = arith.mulf %7, %6 : vector<64x128xf32>
    %9 = vector.broadcast %5 : vector<64x1xf32> to vector<64x128xf32>
    %10 = arith.subf %9, %8 : vector<64x128xf32>
    %11 = tpu.iota {dimensions = array<i32: 0>} : vector<64x128xi32>
    %c0_i32_8 = arith.constant 0 : i32
    %12 = vector.broadcast %c0_i32_8 : i32 to vector<64x128xi32>
    %13 = arith.addi %12, %11 : vector<64x128xi32>
    %cst_9 = arith.constant dense<0x7F800000> : vector<128xf32>
    %14 = vector.multi_reduction <minimumf>, %10, %cst_9 [0] : vector<64x128xf32> to vector<128xf32>
    %15 = vector.shape_cast %14 : vector<128xf32> to vector<1x128xf32>
    %16 = vector.broadcast %15 : vector<1x128xf32> to vector<64x128xf32>
    %17 = arith.cmpf oeq, %10, %16 : vector<64x128xf32>
    %c64_i32 = arith.constant 64 : i32
    %18 = vector.broadcast %c64_i32 : i32 to vector<64x128xi32>
    %19 = arith.select %17, %13, %18 : vector<64x128xi1>, vector<64x128xi32>
    %cst_10 = arith.constant dense<2147483647> : vector<128xi32>
    %20 = vector.multi_reduction <minsi>, %19, %cst_10 [0] : vector<64x128xi32> to vector<128xi32>
    %21 = vector.shape_cast %20 : vector<128xi32> to vector<1x128xi32>
    %22 = arith.cmpf olt, %15, %2 : vector<1x128xf32>
    %23 = arith.select %22, %21, %3 : vector<1x128xi1>, vector<1x128xi32>
    %cst_11 = arith.constant 0.000000e+00 : f32
    %24 = vector.broadcast %cst_11 : f32 to vector<32x128xf32>
    %c0_12 = arith.constant 0 : index
    %c0_13 = arith.constant 0 : index
    %25 = vector.load %arg4[%c0_12, %c0_13] : memref<32x64xf32, #tpu.memory_space<vmem>>, vector<32x64xf32>
    %26 = tpu.iota {dimensions = array<i32: 0>} : vector<64x128xi32>
    %c0_i32_14 = arith.constant 0 : i32
    %27 = vector.broadcast %c0_i32_14 : i32 to vector<64x128xi32>
    %28 = arith.addi %27, %26 : vector<64x128xi32>
    %29 = vector.broadcast %23 : vector<1x128xi32> to vector<64x128xi32>
    %30 = arith.cmpi eq, %28, %29 : vector<64x128xi32>
    %31 = arith.extui %30 : vector<64x128xi1> to vector<64x128xi32>
    %32 = arith.sitofp %31 : vector<64x128xi32> to vector<64x128xf32>
    %cst_15 = arith.constant dense<0.000000e+00> : vector<32x128xf32>
    %33 = tpu.matmul %25, %32, %cst_15 {dimension_numbers = #tpu.dot_dimension_numbers<[1], [0], [0], [1], [0, 0, 1, 1], [], []>} : vector<32x64xf32>, vector<64x128xf32>, vector<32x128xf32> -> vector<32x128xf32>
    %34 = arith.addf %24, %33 : vector<32x128xf32>
    %c128_i32 = arith.constant 128 : i32
    %35 = arith.muli %arg1, %c128_i32 : i32
    %36 = tpu.iota {dimensions = array<i32: 1>} : vector<1x128xi32>
    %37 = vector.broadcast %35 : i32 to vector<1x128xi32>
    %38 = arith.addi %37, %36 : vector<1x128xi32>
    %c256_i32 = arith.constant 256 : i32
    %39 = vector.broadcast %c256_i32 : i32 to vector<1x128xi32>
    %40 = arith.cmpi slt, %38, %39 : vector<1x128xi32>
    %41 = vector.shape_cast %34 : vector<32x128xf32> to vector<1x32x128xf32>
    %c0_16 = arith.constant 0 : index
    %c0_17 = arith.constant 0 : index
    %c0_18 = arith.constant 0 : index
    %42 = vector.load %arg6[%c0_16, %c0_17, %c0_18] : memref<1x32x128xf32, #tpu.memory_space<vmem>>, vector<1x32x128xf32>
    tpu.vector_store %arg6[%c0_16, %c0_17, %c0_18], %41 {strides = array<i32>} : memref<1x32x128xf32, #tpu.memory_space<vmem>>, vector<1x32x128xf32>,
    %43 = vector.shape_cast %23 : vector<1x128xi32> to vector<1x1x128xi32>
    %c0_19 = arith.constant 0 : index
    %c0_20 = arith.constant 0 : index
    %c0_21 = arith.constant 0 : index
    %44 = vector.load %arg7[%c0_19, %c0_20, %c0_21] : memref<1x1x128xi32, #tpu.memory_space<vmem>>, vector<1x1x128xi32>
    tpu.vector_store %arg7[%c0_19, %c0_20, %c0_21], %43 {strides = array<i32>} : memref<1x1x128xi32, #tpu.memory_space<vmem>>, vector<1x1x128xi32>,
    %45 = arith.subf %34, %1 : vector<32x128xf32>
    %cst_22 = arith.constant 0.000000e+00 : f32
    %46 = vector.shape_cast %40 : vector<1x128xi1> to vector<1x128xi1>
    %47 = vector.broadcast %46 : vector<1x128xi1> to vector<32x128xi1>
    %48 = vector.broadcast %cst_22 : f32 to vector<32x128xf32>
    %49 = arith.select %47, %45, %48 : vector<32x128xi1>, vector<32x128xf32>
    %50 = arith.mulf %49, %49 : vector<32x128xf32>
    %51 = vector.shape_cast %50 : vector<32x128xf32> to vector<1x32x128xf32>
    %cst_23 = arith.constant dense<0.000000e+00> : vector<1xf32>
    %52 = vector.multi_reduction <add>, %51, %cst_23 [1, 2] : vector<1x32x128xf32> to vector<1xf32>
    %53 = vector.shape_cast %52 : vector<1xf32> to vector<1x1x1xf32>
    %54 = vector.extract %53[0, 0, 0] : f32 from vector<1x1x1xf32>
    %55 = vector.broadcast %54 : f32 to vector<1x1xf32>
    %56 = vector.shape_cast %55 : vector<1x1xf32> to vector<1x1x1x1xf32>
    %c0_24 = arith.constant 0 : index
    %c0_25 = arith.constant 0 : index
    %c0_26 = arith.constant 0 : index
    %c0_27 = arith.constant 0 : index
    %57 = vector.load %arg8[%c0_24, %c0_25, %c0_26, %c0_27] : memref<1x1x1x1xf32, #tpu.memory_space<vmem>>, vector<1x1x1x1xf32>
    tpu.vector_store %arg8[%c0_24, %c0_25, %c0_26, %c0_27], %56 {strides = array<i32>} : memref<1x1x1x1xf32, #tpu.memory_space<vmem>>, vector<1x1x1x1xf32>,
    return
  }
  func.func @transform_0(%arg0: i32, %arg1: i32) -> (i32, i32, i32) {
    %c0_i32 = arith.constant 0 : i32
    %c0_i32_0 = arith.constant 0 : i32
    return %arg0, %c0_i32, %arg1 : i32, i32, i32
  }
  func.func @transform_1(%arg0: i32, %arg1: i32) -> (i32, i32) {
    %c0_i32 = arith.constant 0 : i32
    %c0_i32_0 = arith.constant 0 : i32
    %c0_i32_1 = arith.constant 0 : i32
    return %c0_i32, %c0_i32_0 : i32, i32
  }
  func.func @transform_2(%arg0: i32, %arg1: i32) -> (i32, i32) {
    %c0_i32 = arith.constant 0 : i32
    %c0_i32_0 = arith.constant 0 : i32
    %c0_i32_1 = arith.constant 0 : i32
    return %c0_i32, %c0_i32_0 : i32, i32
  }
  func.func @transform_3(%arg0: i32, %arg1: i32) -> (i32, i32) {
    %c0_i32 = arith.constant 0 : i32
    %c0_i32_0 = arith.constant 0 : i32
    %c0_i32_1 = arith.constant 0 : i32
    return %c0_i32, %c0_i32_0 : i32, i32
  }
  func.func @transform_4(%arg0: i32, %arg1: i32) -> (i32, i32, i32) {
    %c0_i32 = arith.constant 0 : i32
    %c0_i32_0 = arith.constant 0 : i32
    return %arg0, %c0_i32, %arg1 : i32, i32, i32
  }
  func.func @transform_5(%arg0: i32, %arg1: i32) -> (i32, i32, i32) {
    %c0_i32 = arith.constant 0 : i32
    %c0_i32_0 = arith.constant 0 : i32
    return %arg0, %c0_i32, %arg1 : i32, i32, i32
  }
  func.func @transform_6(%arg0: i32, %arg1: i32) -> (i32, i32, i32, i32) {
    %c0_i32 = arith.constant 0 : i32
    %c0_i32_0 = arith.constant 0 : i32
    %c0_i32_1 = arith.constant 0 : i32
    return %arg0, %arg1, %c0_i32, %c0_i32_0 : i32, i32, i32, i32
  }
}

module attributes {stable_mosaic.version = 11 : i64} {
  func.func @_vq_kernel(%arg0: i32, %arg1: i32, %arg2: memref<1x32x128xf32, #tpu.memory_space<vmem>>, %arg3: memref<64x32xf32, #tpu.memory_space<vmem>>, %arg4: memref<32x64xf32, #tpu.memory_space<vmem>>, %arg5: memref<64x1xf32, #tpu.memory_space<vmem>>, %arg6: memref<1x32x128xf32, #tpu.memory_space<vmem>>, %arg7: memref<1x1x128xi32, #tpu.memory_space<vmem>>, %arg8: memref<1x1x1x1xf32, #tpu.memory_space<vmem>>) attributes {dimension_semantics = [#tpu.dimension_semantics<parallel>, #tpu.dimension_semantics<parallel>], iteration_bounds = array<i64: 2, 2>, scalar_prefetch = 0 : i64, scratch_operands = 0 : i64, tpu.core_type = #tpu.core_type<tc>, window_params = [{transform_indices = @transform_0, window_bounds = array<i64: 1, 32, 128>}, {pipeline_mode = #tpu.pipeline_mode<synchronous>, transform_indices = @transform_1, window_bounds = array<i64: 64, 32>}, {pipeline_mode = #tpu.pipeline_mode<synchronous>, transform_indices = @transform_2, window_bounds = array<i64: 32, 64>}, {pipeline_mode = #tpu.pipeline_mode<synchronous>, transform_indices = @transform_3, window_bounds = array<i64: 64, 1>}, {transform_indices = @transform_4, window_bounds = array<i64: 1, 32, 128>}, {transform_indices = @transform_5, window_bounds = array<i64: 1, 1, 128>}, {transform_indices = @transform_6, window_bounds = array<i64: 1, 1, 1, 1>}]} {
    %c0 = arith.constant 0 : index
    %c0_0 = arith.constant 0 : index
    %c0_1 = arith.constant 0 : index
    %0 = vector.load %arg2[%c0, %c0_0, %c0_1] : memref<1x32x128xf32, #tpu.memory_space<vmem>>, vector<1x32x128xf32>
    %1 = vector.shape_cast %0 : vector<1x32x128xf32> to vector<32x128xf32>
    %cst = arith.constant 0x7F800000 : f32
    %2 = vector.broadcast %cst : f32 to vector<1x128xf32>
    %c0_i32 = arith.constant 0 : i32
    %3 = vector.broadcast %c0_i32 : i32 to vector<1x128xi32>
    %c0_2 = arith.constant 0 : index
    %c0_3 = arith.constant 0 : index
    %4 = vector.load %arg3[%c0_2, %c0_3] : memref<64x32xf32, #tpu.memory_space<vmem>>, vector<64x32xf32>
    %c0_4 = arith.constant 0 : index
    %c0_5 = arith.constant 0 : index
    %5 = vector.load %arg5[%c0_4, %c0_5] : memref<64x1xf32, #tpu.memory_space<vmem>>, vector<64x1xf32>
    %cst_6 = arith.constant dense<0.000000e+00> : vector<64x128xf32>
    %6 = tpu.matmul %4, %1, %cst_6 {dimension_numbers = #tpu.dot_dimension_numbers<[1], [0], [0], [1], [0, 0, 1, 1], [], []>} : vector<64x32xf32>, vector<32x128xf32>, vector<64x128xf32> -> vector<64x128xf32>
    %cst_7 = arith.constant 2.000000e+00 : f32
    %7 = vector.broadcast %cst_7 : f32 to vector<64x128xf32>
    %8 = arith.mulf %7, %6 : vector<64x128xf32>
    %9 = vector.broadcast %5 : vector<64x1xf32> to vector<64x128xf32>
    %10 = arith.subf %9, %8 : vector<64x128xf32>
    %11 = tpu.iota {dimensions = array<i32: 0>} : vector<64x128xi32>
    %c0_i32_8 = arith.constant 0 : i32
    %12 = vector.broadcast %c0_i32_8 : i32 to vector<64x128xi32>
    %13 = arith.addi %12, %11 : vector<64x128xi32>
    %cst_9 = arith.constant dense<0x7F800000> : vector<128xf32>
    %14 = vector.multi_reduction <minimumf>, %10, %cst_9 [0] : vector<64x128xf32> to vector<128xf32>
    %15 = vector.shape_cast %14 : vector<128xf32> to vector<1x128xf32>
    %16 = vector.broadcast %15 : vector<1x128xf32> to vector<64x128xf32>
    %17 = arith.cmpf oeq, %10, %16 : vector<64x128xf32>
    %c64_i32 = arith.constant 64 : i32
    %18 = vector.broadcast %c64_i32 : i32 to vector<64x128xi32>
    %19 = arith.select %17, %13, %18 : vector<64x128xi1>, vector<64x128xi32>
    %cst_10 = arith.constant dense<2147483647> : vector<128xi32>
    %20 = vector.multi_reduction <minsi>, %19, %cst_10 [0] : vector<64x128xi32> to vector<128xi32>
    %21 = vector.shape_cast %20 : vector<128xi32> to vector<1x128xi32>
    %22 = arith.cmpf olt, %15, %2 : vector<1x128xf32>
    %23 = arith.select %22, %21, %3 : vector<1x128xi1>, vector<1x128xi32>
    %cst_11 = arith.constant 0.000000e+00 : f32
    %24 = vector.broadcast %cst_11 : f32 to vector<32x128xf32>
    %c0_12 = arith.constant 0 : index
    %c0_13 = arith.constant 0 : index
    %25 = vector.load %arg4[%c0_12, %c0_13] : memref<32x64xf32, #tpu.memory_space<vmem>>, vector<32x64xf32>
    %26 = tpu.iota {dimensions = array<i32: 0>} : vector<64x128xi32>
    %c0_i32_14 = arith.constant 0 : i32
    %27 = vector.broadcast %c0_i32_14 : i32 to vector<64x128xi32>
    %28 = arith.addi %27, %26 : vector<64x128xi32>
    %29 = vector.broadcast %23 : vector<1x128xi32> to vector<64x128xi32>
    %30 = arith.cmpi eq, %28, %29 : vector<64x128xi32>
    %31 = arith.extui %30 : vector<64x128xi1> to vector<64x128xi32>
    %32 = arith.sitofp %31 : vector<64x128xi32> to vector<64x128xf32>
    %cst_15 = arith.constant dense<0.000000e+00> : vector<32x128xf32>
    %33 = tpu.matmul %25, %32, %cst_15 {dimension_numbers = #tpu.dot_dimension_numbers<[1], [0], [0], [1], [0, 0, 1, 1], [], []>} : vector<32x64xf32>, vector<64x128xf32>, vector<32x128xf32> -> vector<32x128xf32>
    %34 = arith.addf %24, %33 : vector<32x128xf32>
    %c128_i32 = arith.constant 128 : i32
    %35 = arith.muli %arg1, %c128_i32 : i32
    %36 = tpu.iota {dimensions = array<i32: 1>} : vector<1x128xi32>
    %37 = vector.broadcast %35 : i32 to vector<1x128xi32>
    %38 = arith.addi %37, %36 : vector<1x128xi32>
    %c256_i32 = arith.constant 256 : i32
    %39 = vector.broadcast %c256_i32 : i32 to vector<1x128xi32>
    %40 = arith.cmpi slt, %38, %39 : vector<1x128xi32>
    %41 = vector.shape_cast %34 : vector<32x128xf32> to vector<1x32x128xf32>
    %c0_16 = arith.constant 0 : index
    %c0_17 = arith.constant 0 : index
    %c0_18 = arith.constant 0 : index
    %42 = vector.load %arg6[%c0_16, %c0_17, %c0_18] : memref<1x32x128xf32, #tpu.memory_space<vmem>>, vector<1x32x128xf32>
    tpu.vector_store %arg6[%c0_16, %c0_17, %c0_18], %41 {strides = array<i32>} : memref<1x32x128xf32, #tpu.memory_space<vmem>>, vector<1x32x128xf32>,
    %43 = vector.shape_cast %23 : vector<1x128xi32> to vector<1x1x128xi32>
    %c0_19 = arith.constant 0 : index
    %c0_20 = arith.constant 0 : index
    %c0_21 = arith.constant 0 : index
    %44 = vector.load %arg7[%c0_19, %c0_20, %c0_21] : memref<1x1x128xi32, #tpu.memory_space<vmem>>, vector<1x1x128xi32>
    tpu.vector_store %arg7[%c0_19, %c0_20, %c0_21], %43 {strides = array<i32>} : memref<1x1x128xi32, #tpu.memory_space<vmem>>, vector<1x1x128xi32>,
    %45 = arith.subf %34, %1 : vector<32x128xf32>
    %cst_22 = arith.constant 0.000000e+00 : f32
    %46 = vector.shape_cast %40 : vector<1x128xi1> to vector<1x128xi1>
    %47 = vector.broadcast %46 : vector<1x128xi1> to vector<32x128xi1>
    %48 = vector.broadcast %cst_22 : f32 to vector<32x128xf32>
    %49 = arith.select %47, %45, %48 : vector<32x128xi1>, vector<32x128xf32>
    %50 = arith.mulf %49, %49 : vector<32x128xf32>
    %51 = vector.shape_cast %50 : vector<32x128xf32> to vector<1x32x128xf32>
    %cst_23 = arith.constant dense<0.000000e+00> : vector<1xf32>
    %52 = vector.multi_reduction <add>, %51, %cst_23 [1, 2] : vector<1x32x128xf32> to vector<1xf32>
    %53 = vector.shape_cast %52 : vector<1xf32> to vector<1x1x1xf32>
    %54 = vector.extract %53[0, 0, 0] : f32 from vector<1x1x1xf32>
    %55 = vector.broadcast %54 : f32 to vector<1x1xf32>
    %56 = vector.shape_cast %55 : vector<1x1xf32> to vector<1x1x1x1xf32>
    %c0_24 = arith.constant 0 : index
    %c0_25 = arith.constant 0 : index
    %c0_26 = arith.constant 0 : index
    %c0_27 = arith.constant 0 : index
    %57 = vector.load %arg8[%c0_24, %c0_25, %c0_26, %c0_27] : memref<1x1x1x1xf32, #tpu.memory_space<vmem>>, vector<1x1x1x1xf32>
    tpu.vector_store %arg8[%c0_24, %c0_25, %c0_26, %c0_27], %56 {strides = array<i32>} : memref<1x1x1x1xf32, #tpu.memory_space<vmem>>, vector<1x1x1x1xf32>,
    return
  }
  func.func @transform_0(%arg0: i32, %arg1: i32) -> (i32, i32, i32) {
    %c0_i32 = arith.constant 0 : i32
    %c0_i32_0 = arith.constant 0 : i32
    return %arg0, %c0_i32, %arg1 : i32, i32, i32
  }
  func.func @transform_1(%arg0: i32, %arg1: i32) -> (i32, i32) {
    %c0_i32 = arith.constant 0 : i32
    %c0_i32_0 = arith.constant 0 : i32
    %c0_i32_1 = arith.constant 0 : i32
    return %c0_i32, %c0_i32_0 : i32, i32
  }
  func.func @transform_2(%arg0: i32, %arg1: i32) -> (i32, i32) {
    %c0_i32 = arith.constant 0 : i32
    %c0_i32_0 = arith.constant 0 : i32
    %c0_i32_1 = arith.constant 0 : i32
    return %c0_i32, %c0_i32_0 : i32, i32
  }
  func.func @transform_3(%arg0: i32, %arg1: i32) -> (i32, i32) {
    %c0_i32 = arith.constant 0 : i32
    %c0_i32_0 = arith.constant 0 : i32
    %c0_i32_1 = arith.constant 0 : i32
    return %c0_i32, %c0_i32_0 : i32, i32
  }
  func.func @transform_4(%arg0: i32, %arg1: i32) -> (i32, i32, i32) {
    %c0_i32 = arith.constant 0 : i32
    %c0_i32_0 = arith.constant 0 : i32
    return %arg0, %c0_i32, %arg1 : i32, i32, i32
  }
  func.func @transform_5(%arg0: i32, %arg1: i32) -> (i32, i32, i32) {
    %c0_i32 = arith.constant 0 : i32
    %c0_i32_0 = arith.constant 0 : i32
    return %arg0, %c0_i32, %arg1 : i32, i32, i32
  }
  func.func @transform_6(%arg0: i32, %arg1: i32) -> (i32, i32, i32, i32) {
    %c0_i32 = arith.constant 0 : i32
    %c0_i32_0 = arith.constant 0 : i32
    %c0_i32_1 = arith.constant 0 : i32
    return %arg0, %arg1, %c0_i32, %c0_i32_0 : i32, i32, i32, i32
  }
}

</mosaic_0001>

<llo_original>
// kernel: tpu_custom_call.1
$region0: #{tpu_custom_call.1}
  #allocation0 [shape = 'u32[]', space=smem, size = 0x4, offset = 0x4, fixed_abs, tag = 'smem constant byte address 0x4 - core index']
  #allocation1 [shape = 'u32[144,128]{1,0:T(1,128)}', space=vmem, size = 0x12000, scoped, tag = 'internal scratch']
  %s0 = inlined_call_operand.vmem [shape: f32[2,32,256], index: 0, kind: input, shape index: {}]
  %s1 = inlined_call_operand.vmem [shape: f32[64,32], index: 1, kind: input, shape index: {}]
  %s2 = inlined_call_operand.vmem [shape: f32[32,64], index: 2, kind: input, shape index: {}]
  %s3 = inlined_call_operand.vmem [shape: f32[64,1], index: 3, kind: input, shape index: {}]
  %s4 = inlined_call_operand.hbm [shape: f32[2,32,256], index: 4, kind: output, shape index: {0}]
  %s5 = inlined_call_operand.hbm [shape: s32[2,1,256], index: 5, kind: output, shape index: {1}]
  %s6 = inlined_call_operand.vmem [shape: f32[2,2,1,1], index: 6, kind: output, shape index: {2}]
  %7 = xla_tuple %s4, %s5, %s6
  %s8 = sld [smem:[#allocation0]]
  $region103: #{tpu_custom_call.1} parent=0
    _
  %s10 = ssub.s32 1, %s8
  %s11 = scalar_select 0, %s10, %s8
  $region1: #{tpu_custom_call.1} parent=0
    #allocation2 [shape = 'u8[32768]{0}', space=vmem, size = 0x8000, scoped, tag = 'input window, operand 0']
    #allocation3 [shape = 'u8[32768]{0}', space=vmem, size = 0x8000, scoped, tag = 'output window, operand 0']
    #allocation4 [shape = 's32[2]{0}', space=sflag, size = 0x8, scoped, tag = 'scoped memory for tpu_custom_call.1']
    #allocation5 [shape = 'u8[1024]{0}', space=vmem, size = 0x400, scoped, tag = 'output window, operand 1']
    #allocation6 [shape = 's32[2]{0}', space=sflag, size = 0x8, scoped, tag = 'scoped memory for tpu_custom_call.1']
    %12 = vsyncpa [#allocation4], 0
    %s13 = scalar_lea.sflag [#allocation4], 1
    %14 = vsyncpa %s13, 0
    %15 = vsyncpa [#allocation6], 0
    %s16 = scalar_lea.sflag [#allocation6], 1
    %17 = vsyncpa %s16, 0
    loop: start=0, step=1, limit=6
    $region2: #{tpu_custom_call.1} parent=1 // loop_pre_header
      _
    $region3: #{tpu_custom_call.1} parent=1 // loop_header
      %s19 = sphi 0, %s23
      %p20 = scmp.ge.s32.totalorder %s19, 6
      %s26 = sphi 0, %s38
      %s27 = sphi 0, %s34
      %s28 = sphi 0, %s26
      %s29 = sphi 0, %s27
      %s30 = sphi 0, %s28
      %s31 = sphi 0, %s29
      %s43 = sphi 0, %s45
      %s46 = sphi 0, %s43
      %s47 = sphi 0, %s46
      %s63 = sphi 0, %s47
      %s67 = sphi 0, %s67
      %s69 = sphi 0, %s67
      %s70 = sphi 0, %s69
      %s84 = sphi 0, %s70
      %s88 = sphi 0, %s88
      %s90 = sphi 0, %s88
      %s91 = sphi 0, %s90
      %s105 = sphi 0, %s91
      %s109 = sphi 0, %s109
      %s111 = sphi 0, %s109
      %s112 = sphi 0, %s111
      %s126 = sphi 0, %s112
      %s134 = sphi 0, %s136
      %s137 = sphi 0, %s134
      %s138 = sphi 0, %s137
      %s154 = sphi 0, %s138
      %s162 = sphi 0, %s164
      %s165 = sphi 0, %s162
      %s166 = sphi 0, %s165
      %s182 = sphi 0, %s166
      %s190 = sphi 0, %s192
      %s193 = sphi 0, %s190
      %s194 = sphi 0, %s193
      %s210 = sphi 0, %s194
    $region4: #{tpu_custom_call.1} parent=1 // loop_header_branch
      %22 = sbr.rel (%p20) target = $region8
    $region5: #{tpu_custom_call.1} parent=1 // loop_body
      %s24 = ssub.s32 %s19, 1
      %s25 = ssub.s32 %s19, 2
      %s32 = sadd.s32 1, %s27
      %p33 = scmp.ge.s32.totalorder %s32, 2
      %s34 = scalar_select %p33, 0, %s32
      %s35 = sadd.s32 1, %s26
      %s36 = scalar_select %p33, %s35, %s26
      %p37 = scmp.ge.s32.totalorder %s36, 2
      %s38 = scalar_select %p37, 0, %s36
      %s39 = ssub.s32 %s26, %s38
      %s40 = ssub.s32 %s27, %s34
      %s41 = sor.u32 %s39, %s40
      %p42 = scmp.eq.s32.totalorder %s41, 0
      %s44 = sadd.s32 %s43, 1
      %s45 = scalar_select %p42, %s43, %s44
      %p48 = pneg %p42
      %p49 = scmp.eq.s32.totalorder %s19, 3
      %p50 = por %p48, %p49
      %p51 = scmp.ne.s32.totalorder %s43, %s46
      %p52 = scmp.eq.s32.totalorder %s19, 0
      %p53 = por %p51, %p52
      %p54 = scmp.ne.s32.totalorder %s43, %s46
      %p55 = scmp.eq.s32.totalorder %s24, 3
      %p56 = por %p54, %p55
      %p57 = scmp.ne.s32.totalorder %s46, %s47
      %p58 = scmp.eq.s32.totalorder %s24, 0
      %p59 = por %p57, %p58
      %p60 = scmp.ne.s32.totalorder %s46, %s47
      %p61 = scmp.eq.s32.totalorder %s25, 3
      %p62 = por %p60, %p61
      %p64 = scmp.ne.s32.totalorder %s47, %s63
      %p65 = scmp.eq.s32.totalorder %s25, 0
      %p66 = por %p64, %p65
      %s68 = sadd.s32 %s67, 1
      %p71 = scmp.eq.s32.totalorder %s19, 3
      %p72 = scmp.ne.s32.totalorder %s67, %s69
      %p73 = scmp.eq.s32.totalorder %s19, 0
      %p74 = por %p72, %p73
      %p75 = scmp.ne.s32.totalorder %s67, %s69
      %p76 = scmp.eq.s32.totalorder %s24, 3
      %p77 = por %p75, %p76
      %p78 = scmp.ne.s32.totalorder %s69, %s70
      %p79 = scmp.eq.s32.totalorder %s24, 0
      %p80 = por %p78, %p79
      %p81 = scmp.ne.s32.totalorder %s69, %s70
      %p82 = scmp.eq.s32.totalorder %s25, 3
      %p83 = por %p81, %p82
      %p85 = scmp.ne.s32.totalorder %s70, %s84
      %p86 = scmp.eq.s32.totalorder %s25, 0
      %p87 = por %p85, %p86
      %s89 = sadd.s32 %s88, 1
      %p92 = scmp.eq.s32.totalorder %s19, 3
      %p93 = scmp.ne.s32.totalorder %s88, %s90
      %p94 = scmp.eq.s32.totalorder %s19, 0
      %p95 = por %p93, %p94
      %p96 = scmp.ne.s32.totalorder %s88, %s90
      %p97 = scmp.eq.s32.totalorder %s24, 3
      %p98 = por %p96, %p97
      %p99 = scmp.ne.s32.totalorder %s90, %s91
      %p100 = scmp.eq.s32.totalorder %s24, 0
      %p101 = por %p99, %p100
      %p102 = scmp.ne.s32.totalorder %s90, %s91
      %p103 = scmp.eq.s32.totalorder %s25, 3
      %p104 = por %p102, %p103
      %p106 = scmp.ne.s32.totalorder %s91, %s105
      %p107 = scmp.eq.s32.totalorder %s25, 0
      %p108 = por %p106, %p107
      %s110 = sadd.s32 %s109, 1
      %p113 = scmp.eq.s32.totalorder %s19, 3
      %p114 = scmp.ne.s32.totalorder %s109, %s111
      %p115 = scmp.eq.s32.totalorder %s19, 0
      %p116 = por %p114, %p115
      %p117 = scmp.ne.s32.totalorder %s109, %s111
      %p118 = scmp.eq.s32.totalorder %s24, 3
      %p119 = por %p117, %p118
      %p120 = scmp.ne.s32.totalorder %s111, %s112
      %p121 = scmp.eq.s32.totalorder %s24, 0
      %p122 = por %p120, %p121
      %p123 = scmp.ne.s32.totalorder %s111, %s112
      %p124 = scmp.eq.s32.totalorder %s25, 3
      %p125 = por %p123, %p124
      %p127 = scmp.ne.s32.totalorder %s112, %s126
      %p128 = scmp.eq.s32.totalorder %s25, 0
      %p129 = por %p127, %p128
      %s130 = ssub.s32 %s26, %s38
      %s131 = ssub.s32 %s27, %s34
      %s132 = sor.u32 %s130, %s131
      %p133 = scmp.eq.s32.totalorder %s132, 0
      %s135 = sadd.s32 %s134, 1
      %s136 = scalar_select %p133, %s134, %s135
      %p139 = pneg %p133
      %p140 = scmp.eq.s32.totalorder %s19, 3
      %p141 = por %p139, %p140
      %p142 = scmp.ne.s32.totalorder %s134, %s137
      %p143 = scmp.eq.s32.totalorder %s19, 0
      %p144 = por %p142, %p143
      %p145 = scmp.ne.s32.totalorder %s134, %s137
      %p146 = scmp.eq.s32.totalorder %s24, 3
      %p147 = por %p145, %p146
      %p148 = scmp.ne.s32.totalorder %s137, %s138
      %p149 = scmp.eq.s32.totalorder %s24, 0
      %p150 = por %p148, %p149
      %p151 = scmp.ne.s32.totalorder %s137, %s138
      %p152 = scmp.eq.s32.totalorder %s25, 3
      %p153 = por %p151, %p152
      %p155 = scmp.ne.s32.totalorder %s138, %s154
      %p156 = scmp.eq.s32.totalorder %s25, 0
      %p157 = por %p155, %p156
      %s158 = ssub.s32 %s26, %s38
      %s159 = ssub.s32 %s27, %s34
      %s160 = sor.u32 %s158, %s159
      %p161 = scmp.eq.s32.totalorder %s160, 0
      %s163 = sadd.s32 %s162, 1
      %s164 = scalar_select %p161, %s162, %s163
      %p167 = pneg %p161
      %p168 = scmp.eq.s32.totalorder %s19, 3
      %p169 = por %p167, %p168
      %p170 = scmp.ne.s32.totalorder %s162, %s165
      %p171 = scmp.eq.s32.totalorder %s19, 0
      %p172 = por %p170, %p171
      %p173 = scmp.ne.s32.totalorder %s162, %s165
      %p174 = scmp.eq.s32.totalorder %s24, 3
      %p175 = por %p173, %p174
      %p176 = scmp.ne.s32.totalorder %s165, %s166
      %p177 = scmp.eq.s32.totalorder %s24, 0
      %p178 = por %p176, %p177
      %p179 = scmp.ne.s32.totalorder %s165, %s166
      %p180 = scmp.eq.s32.totalorder %s25, 3
      %p181 = por %p179, %p180
      %p183 = scmp.ne.s32.totalorder %s166, %s182
      %p184 = scmp.eq.s32.totalorder %s25, 0
      %p185 = por %p183, %p184
      %s186 = ssub.s32 %s26, %s38
      %s187 = ssub.s32 %s27, %s34
      %s188 = sor.u32 %s186, %s187
      %p189 = scmp.eq.s32.totalorder %s188, 0
      %s191 = sadd.s32 %s190, 1
      %s192 = scalar_select %p189, %s190, %s191
      %p195 = pneg %p189
      %p196 = scmp.eq.s32.totalorder %s19, 3
      %p197 = por %p195, %p196
      %p198 = scmp.ne.s32.totalorder %s190, %s193
      %p199 = scmp.eq.s32.totalorder %s19, 0
      %p200 = por %p198, %p199
      %p201 = scmp.ne.s32.totalorder %s190, %s193
      %p202 = scmp.eq.s32.totalorder %s24, 3
      %p203 = por %p201, %p202
      %p204 = scmp.ne.s32.totalorder %s193, %s194
      %p205 = scmp.eq.s32.totalorder %s24, 0
      %p206 = por %p204, %p205
      %p207 = scmp.ne.s32.totalorder %s193, %s194
      %p208 = scmp.eq.s32.totalorder %s25, 3
      %p209 = por %p207, %p208
      %p211 = scmp.ne.s32.totalorder %s194, %s210
      %p212 = scmp.eq.s32.totalorder %s25, 0
      %p213 = por %p211, %p212
      %p214 = scmp.le.s32.totalorder 1, %s19
      %p215 = scmp.lt.s32.totalorder %s19, 5
      %p216 = pnand %p214, %p215
      %p217 = pneg %p216
      // Predicated region
      $region9: #{tpu_custom_call.1} parent=5 // pred_check
        _
      $region10: #{tpu_custom_call.1} parent=5 // pred_check_branch
        %219 = sbr.rel (%p216) target = $region12
      $region11: #{tpu_custom_call.1} parent=5 // pred_region
        %s220 = ssub.s32 %s19, 1
        // Predicated region
        $region13: #{tpu_custom_call.1} parent=11 // pred_check
          %p221 = pneg %p80
        $region14: #{tpu_custom_call.1} parent=11 // pred_check_branch
          %223 = sbr.rel (%p221) target = $region16
        $region15: #{tpu_custom_call.1} parent=11 // pred_region
          _
        $region16: #{tpu_custom_call.1} parent=11 // pred_fallthru
          _
        // Predicated region
        $region17: #{tpu_custom_call.1} parent=11 // pred_check
          %p224 = pneg %p101
        $region18: #{tpu_custom_call.1} parent=11 // pred_check_branch
          %226 = sbr.rel (%p224) target = $region20
        $region19: #{tpu_custom_call.1} parent=11 // pred_region
          _
        $region20: #{tpu_custom_call.1} parent=11 // pred_fallthru
          _
        // Predicated region
        $region21: #{tpu_custom_call.1} parent=11 // pred_check
          %p227 = pneg %p122
        $region22: #{tpu_custom_call.1} parent=11 // pred_check_branch
          %229 = sbr.rel (%p227) target = $region24
        $region23: #{tpu_custom_call.1} parent=11 // pred_region
          _
        $region24: #{tpu_custom_call.1} parent=11 // pred_fallthru
          _
      $region12: #{tpu_custom_call.1} parent=5 // pred_fallthru
        _
      %p230 = scmp.lt.s32.totalorder %s19, 4
      // Predicated region
      $region25: #{tpu_custom_call.1} parent=5 // pred_check
        %p231 = pneg %p230
      $region26: #{tpu_custom_call.1} parent=5 // pred_check_branch
        %233 = sbr.rel (%p231) target = $region28
      $region27: #{tpu_custom_call.1} parent=5 // pred_region
        // Predicated region
        $region29: #{tpu_custom_call.1} parent=27 // pred_check
          %p234 = pneg %p53
        $region30: #{tpu_custom_call.1} parent=27 // pred_check_branch
          %236 = sbr.rel (%p234) target = $region32
        $region31: #{tpu_custom_call.1} parent=27 // pred_region
          %s237 = sand.u32 %s43, 1
          %s238 = sand.u32 %s43, 1
          %s239 = smul.addr %s238, 32
          %s240 = scalar_lea.vmem [#allocation2], %s239
          %s241 = smul.addr %s26, 8
          %s242 = sadd.s32 %s27, %s241
          %s243 = smul.addr %s242, 8
          %s244 = scalar_lea.vmem %s0, %s243
          // Predicated region
          $region33: #{tpu_custom_call.1} parent=31 // pred_check
            _
          $region34: #{tpu_custom_call.1} parent=31 // pred_check_branch
            %246 = sbr.rel (0) target = $region36
          $region35: #{tpu_custom_call.1} parent=31 // pred_region
            // Predicated region
            $region37: #{tpu_custom_call.1} parent=35 // pred_check
              _
            $region38: #{tpu_custom_call.1} parent=35 // pred_check_branch
              %248 = sbr.rel (0) target = $region40
            $region39: #{tpu_custom_call.1} parent=35 // pred_region
              // Predicated region
              $region52: #{tpu_custom_call.1} parent=39 // pred_check
                _
              $region53: #{tpu_custom_call.1} parent=39 // pred_check_branch
                %269 = sbr.rel (0) target = $region55
              $region54: #{tpu_custom_call.1} parent=39 // pred_region
                loop: start=0, step=1, limit=1
                $region56: #{tpu_custom_call.1} parent=54 // loop_pre_header
                  _
                $region57: #{tpu_custom_call.1} parent=54 // loop_header
                  %s271 = sphi 0, %s275
                  %p272 = scmp.ge.s32.totalorder %s271, 1
                  %s276 = sphi %s244, %s244
                  %s277 = sphi %s240, %s240
                $region58: #{tpu_custom_call.1} parent=54 // loop_header_branch
                  %274 = sbr.rel (%p272) target = $region62
                $region59: #{tpu_custom_call.1} parent=54 // loop_body
                  %v278 = vld [vmem:[%s276] sm:$0xff]
                  %279 = vst [vmem:[%s277] sm:$0xff] %v278
                  %v280 = vld [vmem:[%s276 + $0x10] sm:$0xff]
                  %281 = vst [vmem:[%s277 + $0x8] sm:$0xff] %v280
                  %v282 = vld [vmem:[%s276 + $0x20] sm:$0xff]
                  %283 = vst [vmem:[%s277 + $0x10] sm:$0xff] %v282
                  %v284 = vld [vmem:[%s276 + $0x30] sm:$0xff]
                  %285 = vst [vmem:[%s277 + $0x18] sm:$0xff] %v284
                $region60: #{tpu_custom_call.1} parent=54 // loop_footer
                  %s275 = sadd.s32 1, %s271
                $region61: #{tpu_custom_call.1} parent=54 // loop_footer_branch
                  %270 = sbr.rel target = $region57
                $region62: #{tpu_custom_call.1} parent=54 // loop_exit
                  _
              $region55: #{tpu_custom_call.1} parent=39 // pred_fallthru
                _
              // Predicated region
              $region63: #{tpu_custom_call.1} parent=39 // pred_check
                _
              $region64: #{tpu_custom_call.1} parent=39 // pred_check_branch
                %287 = sbr.rel target = $region66
              $region65: #{tpu_custom_call.1} parent=39 // pred_region
                _
              $region66: #{tpu_custom_call.1} parent=39 // pred_fallthru
                _
            $region40: #{tpu_custom_call.1} parent=35 // pred_fallthru
              _
            // Predicated region
            $region41: #{tpu_custom_call.1} parent=35 // pred_check
              _
            $region42: #{tpu_custom_call.1} parent=35 // pred_check_branch
              %250 = sbr.rel target = $region44
            $region43: #{tpu_custom_call.1} parent=35 // pred_region
              loop: start=0, step=1, limit=1
              $region45: #{tpu_custom_call.1} parent=43 // loop_pre_header
                _
              $region46: #{tpu_custom_call.1} parent=43 // loop_header
                %s253 = sphi 0, %s257
                %p254 = scmp.ge.s32.totalorder %s253, 1
                %s258 = sphi %s244, %s244
                %s259 = sphi %s240, %s240
              $region47: #{tpu_custom_call.1} parent=43 // loop_header_branch
                %256 = sbr.rel (%p254) target = $region51
              $region48: #{tpu_custom_call.1} parent=43 // loop_body
                %v260 = vld [vmem:[%s258] sm:$0xff]
                %261 = vst [vmem:[%s259] sm:$0xff] %v260
                %v262 = vld [vmem:[%s258 + $0x10] sm:$0xff]
                %263 = vst [vmem:[%s259 + $0x8] sm:$0xff] %v262
                %v264 = vld [vmem:[%s258 + $0x20] sm:$0xff]
                %265 = vst [vmem:[%s259 + $0x10] sm:$0xff] %v264
                %v266 = vld [vmem:[%s258 + $0x30] sm:$0xff]
                %267 = vst [vmem:[%s259 + $0x18] sm:$0xff] %v266
              $region49: #{tpu_custom_call.1} parent=43 // loop_footer
                %s257 = sadd.s32 1, %s253
              $region50: #{tpu_custom_call.1} parent=43 // loop_footer_branch
                %252 = sbr.rel target = $region46
              $region51: #{tpu_custom_call.1} parent=43 // loop_exit
                _
            $region44: #{tpu_custom_call.1} parent=35 // pred_fallthru
              _
          $region36: #{tpu_custom_call.1} parent=31 // pred_fallthru
            _
          %288 = vnop
        $region32: #{tpu_custom_call.1} parent=27 // pred_fallthru
          _
      $region28: #{tpu_custom_call.1} parent=5 // pred_fallthru
        _
      %p289 = scmp.le.s32.totalorder 1, %s19
      %p290 = scmp.lt.s32.totalorder %s19, 5
      %p291 = pnand %p289, %p290
      %p292 = pneg %p291
      // Predicated region
      $region67: #{tpu_custom_call.1} parent=5 // pred_check
        _
      $region68: #{tpu_custom_call.1} parent=5 // pred_check_branch
        %294 = sbr.rel (%p291) target = $region70
      $region69: #{tpu_custom_call.1} parent=5 // pred_region
        %s295 = ssub.s32 %s19, 1
        %s296 = sand.u32 %s46, 1
        %s297 = sand.u32 %s46, 1
        %s298 = smul.addr %s297, 32
        %s299 = scalar_lea.vmem [#allocation2], %s298
        // Predicated region
        $region71: #{tpu_custom_call.1} parent=69 // pred_check
          %p300 = pneg %p59
        $region72: #{tpu_custom_call.1} parent=69 // pred_check_branch
          %302 = sbr.rel (%p300) target = $region74
        $region73: #{tpu_custom_call.1} parent=69 // pred_region
          _
        $region74: #{tpu_custom_call.1} parent=69 // pred_fallthru
          _
        %s303 = sand.u32 %s46, 1
        %s304 = sand.u32 %s46, 1
        %s305 = smul.addr %s304, 32
        %s306 = scalar_lea.vmem [#allocation2], %s305
        %p307 = pneg %p59
        %p308 = pneg %p56
        %p309 = pneg %p80
        %p310 = pneg %p77
        %p311 = pneg %p101
        %p312 = pneg %p98
        %p313 = pneg %p122
        %p314 = pneg %p119
        %p315 = pneg %p150
        %p316 = pneg %p147
        %s317 = sand.u32 %s137, 1
        %s318 = scalar_lea.sflag [#allocation4], %s317
        %s319 = sand.u32 %s137, 1
        %s320 = smul.addr %s319, 32
        %s321 = scalar_lea.vmem [#allocation3], %s320
        %p322 = pneg %p178
        %p323 = pneg %p175
        %s324 = sand.u32 %s165, 1
        %s325 = scalar_lea.sflag [#allocation6], %s324
        %s326 = sand.u32 %s165, 1
        %s327 = scalar_lea.vmem [#allocation5], %s326
        %p328 = pneg %p206
        %p329 = pneg %p203
        %p330 = scmp.lt.s32.totalorder %s28, 1
        %s331 = scalar_select %p330, %s28, 1
        %p332 = scmp.lt.s32.totalorder %s29, 1
        %s333 = scalar_select %p332, %s29, 1
        %s334 = smul.addr %s331, 2
        %s335 = sadd.s32 %s333, %s334
        %s336 = scalar_lea.vmem %s6, %s335
        %p337 = scmp.lt.s32.totalorder %s28, 1
        %s338 = scalar_select %p337, %s28, 1
        %p339 = scmp.lt.s32.totalorder %s29, 1
        %s340 = scalar_select %p339, %s29, 1
        %s341 = smul.addr %s338, 2
        %s342 = sadd.s32 %s340, %s341
        %s343 = scalar_lea.vmem %s6, %s342
        %v344 = vld [vmem:[%s299] sm:$0xff]
        %v345 = vld [vmem:[%s299 + $0x8] sm:$0xff]
        %v346 = vld [vmem:[%s299 + $0x10] sm:$0xff]
        %v347 = vld [vmem:[%s299 + $0x18] sm:$0xff]
        %v348 = vld [vmem:[%s1] sm:$0xff]
        %v349 = vld [vmem:[%s1 + $0x8] sm:$0xff]
        %v350 = vld [vmem:[%s1 + $0x10] sm:$0xff]
        %v351 = vld [vmem:[%s1 + $0x18] sm:$0xff]
        %v352 = vld [vmem:[%s1 + $0x20] sm:$0xff]
        %v353 = vld [vmem:[%s1 + $0x28] sm:$0xff]
        %v354 = vld [vmem:[%s1 + $0x30] sm:$0xff]
        %v355 = vld [vmem:[%s1 + $0x38] sm:$0xff]
        %v356 = vld [vmem:[%s3] sm:$0xff]
        %v357 = vld [vmem:[%s3 + $0x8] sm:$0xff]
        %v358 = vld [vmem:[%s3 + $0x10] sm:$0xff]
        %v359 = vld [vmem:[%s3 + $0x18] sm:$0xff]
        %v360 = vld [vmem:[%s3 + $0x20] sm:$0xff]
        %v361 = vld [vmem:[%s3 + $0x28] sm:$0xff]
        %v362 = vld [vmem:[%s3 + $0x30] sm:$0xff]
        %v363 = vld [vmem:[%s3 + $0x38] sm:$0xff]
        %vm364 = vcmask 261120
        %v366 = vsel %vm364, %v348, 0
        %v369 = vsel %vm364, %v349, 0
        %v372 = vsel %vm364, %v350, 0
        %v375 = vsel %vm364, %v351, 0
        %v378 = vsel %vm364, %v352, 0
        %v381 = vsel %vm364, %v353, 0
        %v384 = vsel %vm364, %v354, 0
        %v387 = vsel %vm364, %v355, 0
        %389 = vmatprep.subr.mxu0 0.0
        %390 = vmatpush1.msra.mxu0 %v344
        %391 = vmatprep.subr.mxu0 0.0
        %392 = vmatpush1.msra.mxu0 %v345
        %393 = vmatprep.subr.mxu0 0.0
        %394 = vmatpush1.msra.mxu0 %v346
        %395 = vmatprep.subr.mxu0 0.0
        %396 = vmatpush1.msra.mxu0 %v347
        %397 = vmatprep.subr.mxu0 0.0
        %398 = vmatpush1.msra.mxu0 0.0
        %399 = vmatprep.subr.mxu0 0.0
        %400 = vmatpush1.msra.mxu0 0.0
        %401 = vmatprep.subr.mxu0 0.0
        %402 = vmatpush1.msra.mxu0 0.0
        %403 = vmatprep.subr.mxu0 0.0
        %404 = vmatpush1.msra.mxu0 0.0
        %405 = vmatprep.subr.mxu0 0.0
        %406 = vmatpush1.msra.mxu0 0.0
        %407 = vmatprep.subr.mxu0 0.0
        %408 = vmatpush1.msra.mxu0 0.0
        %409 = vmatprep.subr.mxu0 0.0
        %410 = vmatpush1.msra.mxu0 0.0
        %411 = vmatprep.subr.mxu0 0.0
        %412 = vmatpush1.msra.mxu0 0.0
        %413 = vmatprep.subr.mxu0 0.0
        %414 = vmatpush1.msra.mxu0 0.0
        %415 = vmatprep.subr.mxu0 0.0
        %416 = vmatpush1.msra.mxu0 0.0
        %417 = vmatprep.subr.mxu0 0.0
        %418 = vmatpush1.msra.mxu0 0.0
        %419 = vmatprep.subr.mxu0 0.0
        %420 = vmatpush1.msra.mxu0 0.0
        %421 = vmatprep.subr.mxu0 0.0
        %422 = vmatpush1.msra.mxu0 0.0
        %423 = vmatprep.subr.mxu0 0.0
        %424 = vmatpush1.msra.mxu0 0.0
        %425 = vmatprep.subr.mxu0 0.0
        %426 = vmatpush1.msra.mxu0 0.0
        %427 = vmatprep.subr.mxu0 0.0
        %428 = vmatpush1.msra.mxu0 0.0
        %429 = vmatprep.subr.mxu0 0.0
        %430 = vmatpush1.msra.mxu0 0.0
        %431 = vmatprep.subr.mxu0 0.0
        %432 = vmatpush1.msra.mxu0 0.0
        %433 = vmatprep.subr.mxu0 0.0
        %434 = vmatpush1.msra.mxu0 0.0
        %435 = vmatprep.subr.mxu0 0.0
        %436 = vmatpush1.msra.mxu0 0.0
        %437 = vmatprep.subr.mxu0 0.0
        %438 = vmatpush1.msra.mxu0 0.0
        %439 = vmatprep.subr.mxu0 0.0
        %440 = vmatpush1.msra.mxu0 0.0
        %441 = vmatprep.subr.mxu0 0.0
        %442 = vmatpush1.msra.mxu0 0.0
        %443 = vmatprep.subr.mxu0 0.0
        %444 = vmatpush1.msra.mxu0 0.0
        %445 = vmatprep.subr.mxu0 0.0
        %446 = vmatpush1.msra.mxu0 0.0
        %447 = vmatprep.subr.mxu0 0.0
        %448 = vmatpush1.msra.mxu0 0.0
        %449 = vmatprep.subr.mxu0 0.0
        %450 = vmatpush1.msra.mxu0 0.0
        %451 = vmatprep.subr.mxu0 0.0
        %452 = vmatpush1.msra.mxu0 0.0
        %453 = vmatprep.mubr.f32.mxu0 0.0
        %454 = vmatmul.mubr.f32.gmra.mrb[0].mxu0 %v366
        %v455 = vpop.f32.mrb[0].mxu0
        %v456 = vadd.f32 0.0, %v455
        %v457 = vpop.f32.mrb[0].mxu0
        %458 = vmatprep.mubr.f32.mxu0 0.0
        %459 = vmatmul.mubr.f32.gmra.mrb[0].mxu0 %v369
        %v460 = vpop.f32.mrb[0].mxu0
        %v461 = vadd.f32 0.0, %v460
        %v462 = vpop.f32.mrb[0].mxu0
        %463 = vmatprep.mubr.f32.mxu0 0.0
        %464 = vmatmul.mubr.f32.gmra.mrb[0].mxu0 %v372
        %v465 = vpop.f32.mrb[0].mxu0
        %v466 = vadd.f32 0.0, %v465
        %v467 = vpop.f32.mrb[0].mxu0
        %468 = vmatprep.mubr.f32.mxu0 0.0
        %469 = vmatmul.mubr.f32.gmra.mrb[0].mxu0 %v375
        %v470 = vpop.f32.mrb[0].mxu0
        %v471 = vadd.f32 0.0, %v470
        %v472 = vpop.f32.mrb[0].mxu0
        %473 = vmatprep.mubr.f32.mxu0 0.0
        %474 = vmatmul.mubr.f32.gmra.mrb[0].mxu0 %v378
        %v475 = vpop.f32.mrb[0].mxu0
        %v476 = vadd.f32 0.0, %v475
        %v477 = vpop.f32.mrb[0].mxu0
        %478 = vmatprep.mubr.f32.mxu0 0.0
        %479 = vmatmul.mubr.f32.gmra.mrb[0].mxu0 %v381
        %v480 = vpop.f32.mrb[0].mxu0
        %v481 = vadd.f32 0.0, %v480
        %v482 = vpop.f32.mrb[0].mxu0
        %483 = vmatprep.mubr.f32.mxu0 0.0
        %484 = vmatmul.mubr.f32.gmra.mrb[0].mxu0 %v384
        %v485 = vpop.f32.mrb[0].mxu0
        %v486 = vadd.f32 0.0, %v485
        %v487 = vpop.f32.mrb[0].mxu0
        %488 = vmatprep.mubr.f32.mxu0 0.0
        %489 = vmatmul.mubr.f32.gmra.mrb[0].mxu0 %v387
        %v490 = vpop.f32.mrb[0].mxu0
        %v491 = vadd.f32 0.0, %v490
        %v492 = vpop.f32.mrb[0].mxu0
        %493 = vdwg.mxu0
        %v494 = vmul.f32 %v456, 2.0
        %v495 = vmul.f32 %v461, 2.0
        %v496 = vmul.f32 %v466, 2.0
        %v497 = vmul.f32 %v471, 2.0
        %v498 = vmul.f32 %v476, 2.0
        %v499 = vmul.f32 %v481, 2.0
        %v500 = vmul.f32 %v486, 2.0
        %v501 = vmul.f32 %v491, 2.0
        %503 = vset.pattern.permute.xlu0 0
        %504 = vperm.xlu0 %503, %v356
        %v505 = vpop.permute.xlu0 %504
        %508 = vset.pattern.permute.xlu0 0
        %509 = vperm.xlu0 %508, %v357
        %v510 = vpop.permute.xlu0 %509
        %513 = vset.pattern.permute.xlu0 0
        %514 = vperm.xlu0 %513, %v358
        %v515 = vpop.permute.xlu0 %514
        %518 = vset.pattern.permute.xlu0 0
        %519 = vperm.xlu0 %518, %v359
        %v520 = vpop.permute.xlu0 %519
        %523 = vset.pattern.permute.xlu0 0
        %524 = vperm.xlu0 %523, %v360
        %v525 = vpop.permute.xlu0 %524
        %528 = vset.pattern.permute.xlu0 0
        %529 = vperm.xlu0 %528, %v361
        %v530 = vpop.permute.xlu0 %529
        %533 = vset.pattern.permute.xlu0 0
        %534 = vperm.xlu0 %533, %v362
        %v535 = vpop.permute.xlu0 %534
        %538 = vset.pattern.permute.xlu0 0
        %539 = vperm.xlu0 %538, %v363
        %v540 = vpop.permute.xlu0 %539
        %v542 = vsub.f32 %v505, %v494
        %v543 = vsub.f32 %v510, %v495
        %v544 = vsub.f32 %v515, %v496
        %v545 = vsub.f32 %v520, %v497
        %v546 = vsub.f32 %v525, %v498
        %v547 = vsub.f32 %v530, %v499
        %v548 = vsub.f32 %v535, %v500
        %v549 = vsub.f32 %v540, %v501
        %v550 = vlaneseq
        %v551 = vshrl.u32 %v550, 7
        %v552 = vadd.s32 %v551, 8
        %v553 = vadd.s32 %v551, 16
        %v554 = vadd.s32 %v551, 24
        %v555 = vadd.s32 %v551, 32
        %v556 = vadd.s32 %v551, 40
        %v557 = vadd.s32 %v551, 48
        %v558 = vadd.s32 %v551, 56
        %v559 = vmin.f32 %v542, %v546
        %v560 = vmin.f32 %v543, %v547
        %v561 = vmin.f32 %v544, %v548
        %v562 = vmin.f32 %v545, %v549
        %v563 = vmin.f32 %v559, %v560
        %v564 = vmin.f32 %v561, %v562
        %v565 = vmin.f32 %v563, %v564
        %v566 = vrot.slane %v565, 4
        %v567 = vmin.f32 %v565, %v566
        %v568 = vrot.slane %v567, 2
        %v569 = vmin.f32 %v567, %v568
        %v570 = vrot.slane %v569, 1
        %v571 = vmin.f32 %v569, %v570
        %vm572 = vcmp.eq.f32.partialorder %v542, %v571
        %vm573 = vcmp.eq.f32.partialorder %v543, %v571
        %vm574 = vcmp.eq.f32.partialorder %v544, %v571
        %vm575 = vcmp.eq.f32.partialorder %v545, %v571
        %vm576 = vcmp.eq.f32.partialorder %v546, %v571
        %vm577 = vcmp.eq.f32.partialorder %v547, %v571
        %vm578 = vcmp.eq.f32.partialorder %v548, %v571
        %vm579 = vcmp.eq.f32.partialorder %v549, %v571
        %v580 = vsel %vm572, %v551, 64
        %v581 = vsel %vm573, %v552, 64
        %v582 = vsel %vm574, %v553, 64
        %v583 = vsel %vm575, %v554, 64
        %v584 = vsel %vm576, %v555, 64
        %v585 = vsel %vm577, %v556, 64
        %v586 = vsel %vm578, %v557, 64
        %v587 = vsel %vm579, %v558, 64
        %vm588 = vcmp.lt.s32.totalorder %v580, %v584
        %v589 = vsel %vm588, %v580, %v584
        %vm590 = vcmp.lt.s32.totalorder %v581, %v585
        %v591 = vsel %vm590, %v581, %v585
        %vm592 = vcmp.lt.s32.totalorder %v582, %v586
        %v593 = vsel %vm592, %v582, %v586
        %vm594 = vcmp.lt.s32.totalorder %v583, %v587
        %v595 = vsel %vm594, %v583, %v587
        %vm596 = vcmp.lt.s32.totalorder %v589, %v591
        %v597 = vsel %vm596, %v589, %v591
        %vm598 = vcmp.lt.s32.totalorder %v593, %v595
        %v599 = vsel %vm598, %v593, %v595
        %vm600 = vcmp.lt.s32.totalorder %v597, %v599
        %v601 = vsel %vm600, %v597, %v599
        %v602 = vrot.slane %v601, 4
        %vm603 = vcmp.lt.s32.totalorder %v601, %v602
        %v604 = vsel %vm603, %v601, %v602
        %v605 = vrot.slane %v604, 2
        %vm606 = vcmp.lt.s32.totalorder %v604, %v605
        %v607 = vsel %vm606, %v604, %v605
        %v608 = vrot.slane %v607, 1
        %vm609 = vcmp.lt.s32.totalorder %v607, %v608
        %v610 = vsel %vm609, %v607, %v608
        %vm611 = vcmp.lt.f32.partialorder %v571, inf
        %v612 = vsel %vm611, %v610, 0
        %v613 = vld [vmem:[%s2] sm:$0xff]
        %v614 = vld [vmem:[%s2 + $0x8] sm:$0xff]
        %v615 = vld [vmem:[%s2 + $0x10] sm:$0xff]
        %v616 = vld [vmem:[%s2 + $0x18] sm:$0xff]
        %vm617 = vcmp.eq.s32.totalorder %v551, %v612
        %vm618 = vcmp.eq.s32.totalorder %v552, %v612
        %vm619 = vcmp.eq.s32.totalorder %v553, %v612
        %vm620 = vcmp.eq.s32.totalorder %v554, %v612
        %vm621 = vcmp.eq.s32.totalorder %v555, %v612
        %vm622 = vcmp.eq.s32.totalorder %v556, %v612
        %vm623 = vcmp.eq.s32.totalorder %v557, %v612
        %vm624 = vcmp.eq.s32.totalorder %v558, %v612
        %v625 = vsel %vm617, 1, 0
        %v626 = vsel %vm618, 1, 0
        %v627 = vsel %vm619, 1, 0
        %v628 = vsel %vm620, 1, 0
        %v629 = vsel %vm621, 1, 0
        %v630 = vsel %vm622, 1, 0
        %v631 = vsel %vm623, 1, 0
        %v632 = vsel %vm624, 1, 0
        %v633 = vcvt.s32.f32 %v625
        %v634 = vcvt.s32.f32 %v626
        %v635 = vcvt.s32.f32 %v627
        %v636 = vcvt.s32.f32 %v628
        %v637 = vcvt.s32.f32 %v629
        %v638 = vcvt.s32.f32 %v630
        %v639 = vcvt.s32.f32 %v631
        %v640 = vcvt.s32.f32 %v632
        %vm641 = vcmask 523264
        %v643 = vsel %vm641, %v613, 0
        %v646 = vsel %vm641, %v614, 0
        %v649 = vsel %vm641, %v615, 0
        %v652 = vsel %vm641, %v616, 0
        %654 = vmatprep.subr.mxu0 0.0
        %655 = vmatpush1.msra.mxu0 %v633
        %656 = vmatprep.subr.mxu0 0.0
        %657 = vmatpush1.msra.mxu0 %v634
        %658 = vmatprep.subr.mxu0 0.0
        %659 = vmatpush1.msra.mxu0 %v635
        %660 = vmatprep.subr.mxu0 0.0
        %661 = vmatpush1.msra.mxu0 %v636
        %662 = vmatprep.subr.mxu0 0.0
        %663 = vmatpush1.msra.mxu0 %v637
        %664 = vmatprep.subr.mxu0 0.0
        %665 = vmatpush1.msra.mxu0 %v638
        %666 = vmatprep.subr.mxu0 0.0
        %667 = vmatpush1.msra.mxu0 %v639
        %668 = vmatprep.subr.mxu0 0.0
        %669 = vmatpush1.msra.mxu0 %v640
        %670 = vmatprep.subr.mxu0 0.0
        %671 = vmatpush1.msra.mxu0 0.0
        %672 = vmatprep.subr.mxu0 0.0
        %673 = vmatpush1.msra.mxu0 0.0
        %674 = vmatprep.subr.mxu0 0.0
        %675 = vmatpush1.msra.mxu0 0.0
        %676 = vmatprep.subr.mxu0 0.0
        %677 = vmatpush1.msra.mxu0 0.0
        %678 = vmatprep.subr.mxu0 0.0
        %679 = vmatpush1.msra.mxu0 0.0
        %680 = vmatprep.subr.mxu0 0.0
        %681 = vmatpush1.msra.mxu0 0.0
        %682 = vmatprep.subr.mxu0 0.0
        %683 = vmatpush1.msra.mxu0 0.0
        %684 = vmatprep.subr.mxu0 0.0
        %685 = vmatpush1.msra.mxu0 0.0
        %686 = vmatprep.subr.mxu0 0.0
        %687 = vmatpush1.msra.mxu0 0.0
        %688 = vmatprep.subr.mxu0 0.0
        %689 = vmatpush1.msra.mxu0 0.0
        %690 = vmatprep.subr.mxu0 0.0
        %691 = vmatpush1.msra.mxu0 0.0
        %692 = vmatprep.subr.mxu0 0.0
        %693 = vmatpush1.msra.mxu0 0.0
        %694 = vmatprep.subr.mxu0 0.0
        %695 = vmatpush1.msra.mxu0 0.0
        %696 = vmatprep.subr.mxu0 0.0
        %697 = vmatpush1.msra.mxu0 0.0
        %698 = vmatprep.subr.mxu0 0.0
        %699 = vmatpush1.msra.mxu0 0.0
        %700 = vmatprep.subr.mxu0 0.0
        %701 = vmatpush1.msra.mxu0 0.0
        %702 = vmatprep.subr.mxu0 0.0
        %703 = vmatpush1.msra.mxu0 0.0
        %704 = vmatprep.subr.mxu0 0.0
        %705 = vmatpush1.msra.mxu0 0.0
        %706 = vmatprep.subr.mxu0 0.0
        %707 = vmatpush1.msra.mxu0 0.0
        %708 = vmatprep.subr.mxu0 0.0
        %709 = vmatpush1.msra.mxu0 0.0
        %710 = vmatprep.subr.mxu0 0.0
        %711 = vmatpush1.msra.mxu0 0.0
        %712 = vmatprep.subr.mxu0 0.0
        %713 = vmatpush1.msra.mxu0 0.0
        %714 = vmatprep.subr.mxu0 0.0
        %715 = vmatpush1.msra.mxu0 0.0
        %716 = vmatprep.subr.mxu0 0.0
        %717 = vmatpush1.msra.mxu0 0.0
        %718 = vmatprep.mubr.f32.mxu0 0.0
        %719 = vmatmul.mubr.f32.gmra.mrb[0].mxu0 %v643
        %v720 = vpop.f32.mrb[0].mxu0
        %v721 = vadd.f32 0.0, %v720
        %v722 = vpop.f32.mrb[0].mxu0
        %723 = vmatprep.mubr.f32.mxu0 0.0
        %724 = vmatmul.mubr.f32.gmra.mrb[0].mxu0 %v646
        %v725 = vpop.f32.mrb[0].mxu0
        %v726 = vadd.f32 0.0, %v725
        %v727 = vpop.f32.mrb[0].mxu0
        %728 = vmatprep.mubr.f32.mxu0 0.0
        %729 = vmatmul.mubr.f32.gmra.mrb[0].mxu0 %v649
        %v730 = vpop.f32.mrb[0].mxu0
        %v731 = vadd.f32 0.0, %v730
        %v732 = vpop.f32.mrb[0].mxu0
        %733 = vmatprep.mubr.f32.mxu0 0.0
        %734 = vmatmul.mubr.f32.gmra.mrb[0].mxu0 %v652
        %v735 = vpop.f32.mrb[0].mxu0
        %v736 = vadd.f32 0.0, %v735
        %v737 = vpop.f32.mrb[0].mxu0
        %738 = vdwg.mxu0
        %s739 = smul.u32 %s29, 128
        %v740 = vlaneseq
        %v741 = vand.u32 %v740, 127
        %v742 = vstv %s739
        %v743 = vadd.s32 %v742, %v741
        %vm744 = vcmp.lt.s32.totalorder %v743, 256
        %745 = vst [vmem:[%s321] sm:$0xff] %v721
        %746 = vst [vmem:[%s321 + $0x8] sm:$0xff] %v726
        %747 = vst [vmem:[%s321 + $0x10] sm:$0xff] %v731
        %748 = vst [vmem:[%s321 + $0x18] sm:$0xff] %v736
        %749 = vst [vmem:[%s327] sm:$0x1] %v612
        %v750 = vsub.f32 %v721, %v344
        %v751 = vsub.f32 %v726, %v345
        %v752 = vsub.f32 %v731, %v346
        %v753 = vsub.f32 %v736, %v347
        %v754 = vsel %vm744, 1, 0
        %vm755 = vcmp.eq.s32.totalorder %v754, 1
        %v756 = vsel %vm755, %v750, 0.0
        %v757 = vsel %vm755, %v751, 0.0
        %v758 = vsel %vm755, %v752, 0.0
        %v759 = vsel %vm755, %v753, 0.0
        %v760 = vmul.f32 %v756, %v756
        %v761 = vmul.f32 %v757, %v757
        %v762 = vmul.f32 %v758, %v758
        %v763 = vmul.f32 %v759, %v759
        %v764 = vadd.f32 %v760, %v761
        %v765 = vadd.f32 %v764, %v762
        %v766 = vadd.f32 %v765, %v763
        %767 = vadd.xlane.f32.xlu0 %v766
        %v768 = vpop.xlane.xlu0 %767
        %v769 = vrot.slane %v768, 4
        %v770 = vadd.f32 %v768, %v769
        %v771 = vrot.slane %v770, 2
        %v772 = vadd.f32 %v770, %v771
        %v773 = vrot.slane %v772, 1
        %v774 = vadd.f32 %v772, %v773
        %s775 = vtos %v774
        %v776 = vstv %s775
        %vm777 = vcmask 0
        %778 = vst.msk [vmem:[%s343] sm:$0x1] %vm777, %v776
        %s779 = sand.u32 %s137, 1
        %s780 = scalar_lea.sflag [#allocation4], %s779
        %s781 = sand.u32 %s137, 1
        %s782 = smul.addr %s781, 32
        %s783 = scalar_lea.vmem [#allocation3], %s782
        %s784 = sand.u32 %s165, 1
        %s785 = scalar_lea.sflag [#allocation6], %s784
        %s786 = sand.u32 %s165, 1
        %s787 = scalar_lea.vmem [#allocation5], %s786
        %p788 = scmp.lt.s32.totalorder %s28, 1
        %s789 = scalar_select %p788, %s28, 1
        %p790 = scmp.lt.s32.totalorder %s29, 1
        %s791 = scalar_select %p790, %s29, 1
        %s792 = smul.addr %s789, 2
        %s793 = sadd.s32 %s791, %s792
        %s794 = scalar_lea.vmem %s6, %s793
        // Predicated region
        $region75: #{tpu_custom_call.1} parent=69 // pred_check
          %p795 = pneg %p147
        $region76: #{tpu_custom_call.1} parent=69 // pred_check_branch
          %797 = sbr.rel (%p795) target = $region78
        $region77: #{tpu_custom_call.1} parent=69 // pred_region
          %s799 = ssub.s32 512, 512
          %800 = vsyncadd %s780, %s799
          %s801 = smul.addr %s28, 8
          %s802 = sadd.s32 %s29, %s801
          %s803 = smul.addr %s802, 128
          %s804 = scalar_lea.hbm %s4, %s803
          %s805 = sshll.u32 %s783, 4
          %s806 = int_to_ptr.vmem [resolvable:$true] %s805
          %811 = dma.vmem_to_hbm [thread:$0]  %s806, 512, %s804, %s780, 128, 256, 8
        $region78: #{tpu_custom_call.1} parent=69 // pred_fallthru
          _
        // Predicated region
        $region79: #{tpu_custom_call.1} parent=69 // pred_check
          %p812 = pneg %p175
        $region80: #{tpu_custom_call.1} parent=69 // pred_check_branch
          %814 = sbr.rel (%p812) target = $region82
        $region81: #{tpu_custom_call.1} parent=69 // pred_region
          %s816 = ssub.s32 16, 16
          %817 = vsyncadd %s785, %s816
          %s818 = smul.addr %s28, 2
          %s819 = sadd.s32 %s29, %s818
          %s820 = smul.addr %s819, 16
          %s821 = scalar_lea.hbm %s5, %s820
          %s823 = sshll.u32 %s787, 4
          %s824 = int_to_ptr.vmem [resolvable:$true] %s823
          %826 = dma.vmem_to_hbm [thread:$0]  %s824, 16, %s821, %s785
        $region82: #{tpu_custom_call.1} parent=69 // pred_fallthru
          _
        // Predicated region
        $region83: #{tpu_custom_call.1} parent=69 // pred_check
          %p827 = pneg %p203
        $region84: #{tpu_custom_call.1} parent=69 // pred_check_branch
          %829 = sbr.rel (%p827) target = $region86
        $region85: #{tpu_custom_call.1} parent=69 // pred_region
          _
        $region86: #{tpu_custom_call.1} parent=69 // pred_fallthru
          _
      $region70: #{tpu_custom_call.1} parent=5 // pred_fallthru
        _
      %p830 = scmp.le.s32.totalorder 2, %s19
      // Predicated region
      $region87: #{tpu_custom_call.1} parent=5 // pred_check
        %p831 = pneg %p830
      $region88: #{tpu_custom_call.1} parent=5 // pred_check_branch
        %833 = sbr.rel (%p831) target = $region90
      $region89: #{tpu_custom_call.1} parent=5 // pred_region
        %s834 = ssub.s32 %s19, 2
        // Predicated region
        $region91: #{tpu_custom_call.1} parent=89 // pred_check
          %p835 = pneg %p153
        $region92: #{tpu_custom_call.1} parent=89 // pred_check_branch
          %837 = sbr.rel (%p835) target = $region94
        $region93: #{tpu_custom_call.1} parent=89 // pred_region
          %s838 = sand.u32 %s138, 1
          %s839 = scalar_lea.sflag [#allocation4], %s838
          %s840 = sand.u32 %s138, 1
          %s841 = smul.addr %s840, 32
          %s842 = scalar_lea.vmem [#allocation3], %s841
          %843 = dma.done %s839, 512
        $region94: #{tpu_custom_call.1} parent=89 // pred_fallthru
          _
        // Predicated region
        $region95: #{tpu_custom_call.1} parent=89 // pred_check
          %p844 = pneg %p181
        $region96: #{tpu_custom_call.1} parent=89 // pred_check_branch
          %846 = sbr.rel (%p844) target = $region98
        $region97: #{tpu_custom_call.1} parent=89 // pred_region
          %s847 = sand.u32 %s166, 1
          %s848 = scalar_lea.sflag [#allocation6], %s847
          %s849 = sand.u32 %s166, 1
          %s850 = scalar_lea.vmem [#allocation5], %s849
          %851 = dma.done %s848, 16
        $region98: #{tpu_custom_call.1} parent=89 // pred_fallthru
          _
        // Predicated region
        $region99: #{tpu_custom_call.1} parent=89 // pred_check
          %p852 = pneg %p209
        $region100: #{tpu_custom_call.1} parent=89 // pred_check_branch
          %854 = sbr.rel (%p852) target = $region102
        $region101: #{tpu_custom_call.1} parent=89 // pred_region
          %p855 = scmp.lt.s32.totalorder %s30, 1
          %s856 = scalar_select %p855, %s30, 1
          %p857 = scmp.lt.s32.totalorder %s31, 1
          %s858 = scalar_select %p857, %s31, 1
          %s859 = smul.addr %s856, 2
          %s860 = sadd.s32 %s858, %s859
          %s861 = scalar_lea.vmem %s6, %s860
        $region102: #{tpu_custom_call.1} parent=89 // pred_fallthru
          _
      $region90: #{tpu_custom_call.1} parent=5 // pred_fallthru
        _
    $region6: #{tpu_custom_call.1} parent=1 // loop_footer
      %s23 = sadd.s32 1, %s19
    $region7: #{tpu_custom_call.1} parent=1 // loop_footer_branch
      %18 = sbr.rel target = $region3
    $region8: #{tpu_custom_call.1} parent=1 // loop_exit
      _
    %862 = vsyncpa [#allocation4], 1
    %s863 = scalar_lea.sflag [#allocation4], 1
    %864 = vsyncpa %s863, 1
    %865 = vsyncpa [#allocation6], 1
    %s866 = scalar_lea.sflag [#allocation6], 1
    %867 = vsyncpa %s866, 1

// kernel: tpu_custom_call.1
$region0: #{tpu_custom_call.1}
  #allocation0 [shape = 'u32[]', space=smem, size = 0x4, offset = 0x4, fixed_abs, tag = 'smem constant byte address 0x4 - core index']
  #allocation1 [shape = 'u32[144,128]{1,0:T(1,128)}', space=vmem, size = 0x12000, scoped, tag = 'internal scratch']
  %s0 = inlined_call_operand.vmem [shape: f32[2,32,256], index: 0, kind: input, shape index: {}]
  %s1 = inlined_call_operand.vmem [shape: f32[64,32], index: 1, kind: input, shape index: {}]
  %s2 = inlined_call_operand.vmem [shape: f32[32,64], index: 2, kind: input, shape index: {}]
  %s3 = inlined_call_operand.vmem [shape: f32[64,1], index: 3, kind: input, shape index: {}]
  %s4 = inlined_call_operand.hbm [shape: f32[2,32,256], index: 4, kind: output, shape index: {0}]
  %s5 = inlined_call_operand.hbm [shape: s32[2,1,256], index: 5, kind: output, shape index: {1}]
  %s6 = inlined_call_operand.vmem [shape: f32[2,2,1,1], index: 6, kind: output, shape index: {2}]
  %7 = xla_tuple %s4, %s5, %s6
  %s8 = sld [smem:[#allocation0]]
  $region103: #{tpu_custom_call.1} parent=0
    _
  %s10 = ssub.s32 1, %s8
  %s11 = scalar_select 0, %s10, %s8
  $region1: #{tpu_custom_call.1} parent=0
    #allocation2 [shape = 'u8[32768]{0}', space=vmem, size = 0x8000, scoped, tag = 'input window, operand 0']
    #allocation3 [shape = 'u8[32768]{0}', space=vmem, size = 0x8000, scoped, tag = 'output window, operand 0']
    #allocation4 [shape = 's32[2]{0}', space=sflag, size = 0x8, scoped, tag = 'scoped memory for tpu_custom_call.1']
    #allocation5 [shape = 'u8[1024]{0}', space=vmem, size = 0x400, scoped, tag = 'output window, operand 1']
    #allocation6 [shape = 's32[2]{0}', space=sflag, size = 0x8, scoped, tag = 'scoped memory for tpu_custom_call.1']
    %12 = vsyncpa [#allocation4], 0
    %s13 = scalar_lea.sflag [#allocation4], 1
    %14 = vsyncpa %s13, 0
    %15 = vsyncpa [#allocation6], 0
    %s16 = scalar_lea.sflag [#allocation6], 1
    %17 = vsyncpa %s16, 0
    loop: start=0, step=1, limit=6
    $region2: #{tpu_custom_call.1} parent=1 // loop_pre_header
      _
    $region3: #{tpu_custom_call.1} parent=1 // loop_header
      %s19 = sphi 0, %s23
      %p20 = scmp.ge.s32.totalorder %s19, 6
      %s26 = sphi 0, %s38
      %s27 = sphi 0, %s34
      %s28 = sphi 0, %s26
      %s29 = sphi 0, %s27
      %s30 = sphi 0, %s28
      %s31 = sphi 0, %s29
      %s43 = sphi 0, %s45
      %s46 = sphi 0, %s43
      %s47 = sphi 0, %s46
      %s63 = sphi 0, %s47
      %s67 = sphi 0, %s67
      %s69 = sphi 0, %s67
      %s70 = sphi 0, %s69
      %s84 = sphi 0, %s70
      %s88 = sphi 0, %s88
      %s90 = sphi 0, %s88
      %s91 = sphi 0, %s90
      %s105 = sphi 0, %s91
      %s109 = sphi 0, %s109
      %s111 = sphi 0, %s109
      %s112 = sphi 0, %s111
      %s126 = sphi 0, %s112
      %s134 = sphi 0, %s136
      %s137 = sphi 0, %s134
      %s138 = sphi 0, %s137
      %s154 = sphi 0, %s138
      %s162 = sphi 0, %s164
      %s165 = sphi 0, %s162
      %s166 = sphi 0, %s165
      %s182 = sphi 0, %s166
      %s190 = sphi 0, %s192
      %s193 = sphi 0, %s190
      %s194 = sphi 0, %s193
      %s210 = sphi 0, %s194
    $region4: #{tpu_custom_call.1} parent=1 // loop_header_branch
      %22 = sbr.rel (%p20) target = $region8
    $region5: #{tpu_custom_call.1} parent=1 // loop_body
      %s24 = ssub.s32 %s19, 1
      %s25 = ssub.s32 %s19, 2
      %s32 = sadd.s32 1, %s27
      %p33 = scmp.ge.s32.totalorder %s32, 2
      %s34 = scalar_select %p33, 0, %s32
      %s35 = sadd.s32 1, %s26
      %s36 = scalar_select %p33, %s35, %s26
      %p37 = scmp.ge.s32.totalorder %s36, 2
      %s38 = scalar_select %p37, 0, %s36
      %s39 = ssub.s32 %s26, %s38
      %s40 = ssub.s32 %s27, %s34
      %s41 = sor.u32 %s39, %s40
      %p42 = scmp.eq.s32.totalorder %s41, 0
      %s44 = sadd.s32 %s43, 1
      %s45 = scalar_select %p42, %s43, %s44
      %p48 = pneg %p42
      %p49 = scmp.eq.s32.totalorder %s19, 3
      %p50 = por %p48, %p49
      %p51 = scmp.ne.s32.totalorder %s43, %s46
      %p52 = scmp.eq.s32.totalorder %s19, 0
      %p53 = por %p51, %p52
      %p54 = scmp.ne.s32.totalorder %s43, %s46
      %p55 = scmp.eq.s32.totalorder %s24, 3
      %p56 = por %p54, %p55
      %p57 = scmp.ne.s32.totalorder %s46, %s47
      %p58 = scmp.eq.s32.totalorder %s24, 0
      %p59 = por %p57, %p58
      %p60 = scmp.ne.s32.totalorder %s46, %s47
      %p61 = scmp.eq.s32.totalorder %s25, 3
      %p62 = por %p60, %p61
      %p64 = scmp.ne.s32.totalorder %s47, %s63
      %p65 = scmp.eq.s32.totalorder %s25, 0
      %p66 = por %p64, %p65
      %s68 = sadd.s32 %s67, 1
      %p71 = scmp.eq.s32.totalorder %s19, 3
      %p72 = scmp.ne.s32.totalorder %s67, %s69
      %p73 = scmp.eq.s32.totalorder %s19, 0
      %p74 = por %p72, %p73
      %p75 = scmp.ne.s32.totalorder %s67, %s69
      %p76 = scmp.eq.s32.totalorder %s24, 3
      %p77 = por %p75, %p76
      %p78 = scmp.ne.s32.totalorder %s69, %s70
      %p79 = scmp.eq.s32.totalorder %s24, 0
      %p80 = por %p78, %p79
      %p81 = scmp.ne.s32.totalorder %s69, %s70
      %p82 = scmp.eq.s32.totalorder %s25, 3
      %p83 = por %p81, %p82
      %p85 = scmp.ne.s32.totalorder %s70, %s84
      %p86 = scmp.eq.s32.totalorder %s25, 0
      %p87 = por %p85, %p86
      %s89 = sadd.s32 %s88, 1
      %p92 = scmp.eq.s32.totalorder %s19, 3
      %p93 = scmp.ne.s32.totalorder %s88, %s90
      %p94 = scmp.eq.s32.totalorder %s19, 0
      %p95 = por %p93, %p94
      %p96 = scmp.ne.s32.totalorder %s88, %s90
      %p97 = scmp.eq.s32.totalorder %s24, 3
      %p98 = por %p96, %p97
      %p99 = scmp.ne.s32.totalorder %s90, %s91
      %p100 = scmp.eq.s32.totalorder %s24, 0
      %p101 = por %p99, %p100
      %p102 = scmp.ne.s32.totalorder %s90, %s91
      %p103 = scmp.eq.s32.totalorder %s25, 3
      %p104 = por %p102, %p103
      %p106 = scmp.ne.s32.totalorder %s91, %s105
      %p107 = scmp.eq.s32.totalorder %s25, 0
      %p108 = por %p106, %p107
      %s110 = sadd.s32 %s109, 1
      %p113 = scmp.eq.s32.totalorder %s19, 3
      %p114 = scmp.ne.s32.totalorder %s109, %s111
      %p115 = scmp.eq.s32.totalorder %s19, 0
      %p116 = por %p114, %p115
      %p117 = scmp.ne.s32.totalorder %s109, %s111
      %p118 = scmp.eq.s32.totalorder %s24, 3
      %p119 = por %p117, %p118
      %p120 = scmp.ne.s32.totalorder %s111, %s112
      %p121 = scmp.eq.s32.totalorder %s24, 0
      %p122 = por %p120, %p121
      %p123 = scmp.ne.s32.totalorder %s111, %s112
      %p124 = scmp.eq.s32.totalorder %s25, 3
      %p125 = por %p123, %p124
      %p127 = scmp.ne.s32.totalorder %s112, %s126
      %p128 = scmp.eq.s32.totalorder %s25, 0
      %p129 = por %p127, %p128
      %s130 = ssub.s32 %s26, %s38
      %s131 = ssub.s32 %s27, %s34
      %s132 = sor.u32 %s130, %s131
      %p133 = scmp.eq.s32.totalorder %s132, 0
      %s135 = sadd.s32 %s134, 1
      %s136 = scalar_select %p133, %s134, %s135
      %p139 = pneg %p133
      %p140 = scmp.eq.s32.totalorder %s19, 3
      %p141 = por %p139, %p140
      %p142 = scmp.ne.s32.totalorder %s134, %s137
      %p143 = scmp.eq.s32.totalorder %s19, 0
      %p144 = por %p142, %p143
      %p145 = scmp.ne.s32.totalorder %s134, %s137
      %p146 = scmp.eq.s32.totalorder %s24, 3
      %p147 = por %p145, %p146
      %p148 = scmp.ne.s32.totalorder %s137, %s138
      %p149 = scmp.eq.s32.totalorder %s24, 0
      %p150 = por %p148, %p149
      %p151 = scmp.ne.s32.totalorder %s137, %s138
      %p152 = scmp.eq.s32.totalorder %s25, 3
      %p153 = por %p151, %p152
      %p155 = scmp.ne.s32.totalorder %s138, %s154
      %p156 = scmp.eq.s32.totalorder %s25, 0
      %p157 = por %p155, %p156
      %s158 = ssub.s32 %s26, %s38
      %s159 = ssub.s32 %s27, %s34
      %s160 = sor.u32 %s158, %s159
      %p161 = scmp.eq.s32.totalorder %s160, 0
      %s163 = sadd.s32 %s162, 1
      %s164 = scalar_select %p161, %s162, %s163
      %p167 = pneg %p161
      %p168 = scmp.eq.s32.totalorder %s19, 3
      %p169 = por %p167, %p168
      %p170 = scmp.ne.s32.totalorder %s162, %s165
      %p171 = scmp.eq.s32.totalorder %s19, 0
      %p172 = por %p170, %p171
      %p173 = scmp.ne.s32.totalorder %s162, %s165
      %p174 = scmp.eq.s32.totalorder %s24, 3
      %p175 = por %p173, %p174
      %p176 = scmp.ne.s32.totalorder %s165, %s166
      %p177 = scmp.eq.s32.totalorder %s24, 0
      %p178 = por %p176, %p177
      %p179 = scmp.ne.s32.totalorder %s165, %s166
      %p180 = scmp.eq.s32.totalorder %s25, 3
      %p181 = por %p179, %p180
      %p183 = scmp.ne.s32.totalorder %s166, %s182
      %p184 = scmp.eq.s32.totalorder %s25, 0
      %p185 = por %p183, %p184
      %s186 = ssub.s32 %s26, %s38
      %s187 = ssub.s32 %s27, %s34
      %s188 = sor.u32 %s186, %s187
      %p189 = scmp.eq.s32.totalorder %s188, 0
      %s191 = sadd.s32 %s190, 1
      %s192 = scalar_select %p189, %s190, %s191
      %p195 = pneg %p189
      %p196 = scmp.eq.s32.totalorder %s19, 3
      %p197 = por %p195, %p196
      %p198 = scmp.ne.s32.totalorder %s190, %s193
      %p199 = scmp.eq.s32.totalorder %s19, 0
      %p200 = por %p198, %p199
      %p201 = scmp.ne.s32.totalorder %s190, %s193
      %p202 = scmp.eq.s32.totalorder %s24, 3
      %p203 = por %p201, %p202
      %p204 = scmp.ne.s32.totalorder %s193, %s194
      %p205 = scmp.eq.s32.totalorder %s24, 0
      %p206 = por %p204, %p205
      %p207 = scmp.ne.s32.totalorder %s193, %s194
      %p208 = scmp.eq.s32.totalorder %s25, 3
      %p209 = por %p207, %p208
      %p211 = scmp.ne.s32.totalorder %s194, %s210
      %p212 = scmp.eq.s32.totalorder %s25, 0
      %p213 = por %p211, %p212
      %p214 = scmp.le.s32.totalorder 1, %s19
      %p215 = scmp.lt.s32.totalorder %s19, 5
      %p216 = pnand %p214, %p215
      %p217 = pneg %p216
      // Predicated region
      $region9: #{tpu_custom_call.1} parent=5 // pred_check
        _
      $region10: #{tpu_custom_call.1} parent=5 // pred_check_branch
        %219 = sbr.rel (%p216) target = $region12
      $region11: #{tpu_custom_call.1} parent=5 // pred_region
        %s220 = ssub.s32 %s19, 1
        // Predicated region
        $region13: #{tpu_custom_call.1} parent=11 // pred_check
          %p221 = pneg %p80
        $region14: #{tpu_custom_call.1} parent=11 // pred_check_branch
          %223 = sbr.rel (%p221) target = $region16
        $region15: #{tpu_custom_call.1} parent=11 // pred_region
          _
        $region16: #{tpu_custom_call.1} parent=11 // pred_fallthru
          _
        // Predicated region
        $region17: #{tpu_custom_call.1} parent=11 // pred_check
          %p224 = pneg %p101
        $region18: #{tpu_custom_call.1} parent=11 // pred_check_branch
          %226 = sbr.rel (%p224) target = $region20
        $region19: #{tpu_custom_call.1} parent=11 // pred_region
          _
        $region20: #{tpu_custom_call.1} parent=11 // pred_fallthru
          _
        // Predicated region
        $region21: #{tpu_custom_call.1} parent=11 // pred_check
          %p227 = pneg %p122
        $region22: #{tpu_custom_call.1} parent=11 // pred_check_branch
          %229 = sbr.rel (%p227) target = $region24
        $region23: #{tpu_custom_call.1} parent=11 // pred_region
          _
        $region24: #{tpu_custom_call.1} parent=11 // pred_fallthru
          _
      $region12: #{tpu_custom_call.1} parent=5 // pred_fallthru
        _
      %p230 = scmp.lt.s32.totalorder %s19, 4
      // Predicated region
      $region25: #{tpu_custom_call.1} parent=5 // pred_check
        %p231 = pneg %p230
      $region26: #{tpu_custom_call.1} parent=5 // pred_check_branch
        %233 = sbr.rel (%p231) target = $region28
      $region27: #{tpu_custom_call.1} parent=5 // pred_region
        // Predicated region
        $region29: #{tpu_custom_call.1} parent=27 // pred_check
          %p234 = pneg %p53
        $region30: #{tpu_custom_call.1} parent=27 // pred_check_branch
          %236 = sbr.rel (%p234) target = $region32
        $region31: #{tpu_custom_call.1} parent=27 // pred_region
          %s237 = sand.u32 %s43, 1
          %s238 = sand.u32 %s43, 1
          %s239 = smul.addr %s238, 32
          %s240 = scalar_lea.vmem [#allocation2], %s239
          %s241 = smul.addr %s26, 8
          %s242 = sadd.s32 %s27, %s241
          %s243 = smul.addr %s242, 8
          %s244 = scalar_lea.vmem %s0, %s243
          // Predicated region
          $region33: #{tpu_custom_call.1} parent=31 // pred_check
            _
          $region34: #{tpu_custom_call.1} parent=31 // pred_check_branch
            %246 = sbr.rel (0) target = $region36
          $region35: #{tpu_custom_call.1} parent=31 // pred_region
            // Predicated region
            $region37: #{tpu_custom_call.1} parent=35 // pred_check
              _
            $region38: #{tpu_custom_call.1} parent=35 // pred_check_branch
              %248 = sbr.rel (0) target = $region40
            $region39: #{tpu_custom_call.1} parent=35 // pred_region
              // Predicated region
              $region52: #{tpu_custom_call.1} parent=39 // pred_check
                _
              $region53: #{tpu_custom_call.1} parent=39 // pred_check_branch
                %269 = sbr.rel (0) target = $region55
              $region54: #{tpu_custom_call.1} parent=39 // pred_region
                loop: start=0, step=1, limit=1
                $region56: #{tpu_custom_call.1} parent=54 // loop_pre_header
                  _
                $region57: #{tpu_custom_call.1} parent=54 // loop_header
                  %s271 = sphi 0, %s275
                  %p272 = scmp.ge.s32.totalorder %s271, 1
                  %s276 = sphi %s244, %s244
                  %s277 = sphi %s240, %s240
                $region58: #{tpu_custom_call.1} parent=54 // loop_header_branch
                  %274 = sbr.rel (%p272) target = $region62
                $region59: #{tpu_custom_call.1} parent=54 // loop_body
                  %v278 = vld [vmem:[%s276] sm:$0xff]
                  %279 = vst [vmem:[%s277] sm:$0xff] %v278
                  %v280 = vld [vmem:[%s276 + $0x10] sm:$0xff]
                  %281 = vst [vmem:[%s277 + $0x8] sm:$0xff] %v280
                  %v282 = vld [vmem:[%s276 + $0x20] sm:$0xff]
                  %283 = vst [vmem:[%s277 + $0x10] sm:$0xff] %v282
                  %v284 = vld [vmem:[%s276 + $0x30] sm:$0xff]
                  %285 = vst [vmem:[%s277 + $0x18] sm:$0xff] %v284
                $region60: #{tpu_custom_call.1} parent=54 // loop_footer
                  %s275 = sadd.s32 1, %s271
                $region61: #{tpu_custom_call.1} parent=54 // loop_footer_branch
                  %270 = sbr.rel target = $region57
                $region62: #{tpu_custom_call.1} parent=54 // loop_exit
                  _
              $region55: #{tpu_custom_call.1} parent=39 // pred_fallthru
                _
              // Predicated region
              $region63: #{tpu_custom_call.1} parent=39 // pred_check
                _
              $region64: #{tpu_custom_call.1} parent=39 // pred_check_branch
                %287 = sbr.rel target = $region66
              $region65: #{tpu_custom_call.1} parent=39 // pred_region
                _
              $region66: #{tpu_custom_call.1} parent=39 // pred_fallthru
                _
            $region40: #{tpu_custom_call.1} parent=35 // pred_fallthru
              _
            // Predicated region
            $region41: #{tpu_custom_call.1} parent=35 // pred_check
              _
            $region42: #{tpu_custom_call.1} parent=35 // pred_check_branch
              %250 = sbr.rel target = $region44
            $region43: #{tpu_custom_call.1} parent=35 // pred_region
              loop: start=0, step=1, limit=1
              $region45: #{tpu_custom_call.1} parent=43 // loop_pre_header
                _
              $region46: #{tpu_custom_call.1} parent=43 // loop_header
                %s253 = sphi 0, %s257
                %p254 = scmp.ge.s32.totalorder %s253, 1
                %s258 = sphi %s244, %s244
                %s259 = sphi %s240, %s240
              $region47: #{tpu_custom_call.1} parent=43 // loop_header_branch
                %256 = sbr.rel (%p254) target = $region51
              $region48: #{tpu_custom_call.1} parent=43 // loop_body
                %v260 = vld [vmem:[%s258] sm:$0xff]
                %261 = vst [vmem:[%s259] sm:$0xff] %v260
                %v262 = vld [vmem:[%s258 + $0x10] sm:$0xff]
                %263 = vst [vmem:[%s259 + $0x8] sm:$0xff] %v262
                %v264 = vld [vmem:[%s258 + $0x20] sm:$0xff]
                %265 = vst [vmem:[%s259 + $0x10] sm:$0xff] %v264
                %v266 = vld [vmem:[%s258 + $0x30] sm:$0xff]
                %267 = vst [vmem:[%s259 + $0x18] sm:$0xff] %v266
              $region49: #{tpu_custom_call.1} parent=43 // loop_footer
                %s257 = sadd.s32 1, %s253
              $region50: #{tpu_custom_call.1} parent=43 // loop_footer_branch
                %252 = sbr.rel target = $region46
              $region51: #{tpu_custom_call.1} parent=43 // loop_exit
                _
            $region44: #{tpu_custom_call.1} parent=35 // pred_fallthru
              _
          $region36: #{tpu_custom_call.1} parent=31 // pred_fallthru
            _
          %288 = vnop
        $region32: #{tpu_custom_call.1} parent=27 // pred_fallthru
          _
      $region28: #{tpu_custom_call.1} parent=5 // pred_fallthru
        _
      %p289 = scmp.le.s32.totalorder 1, %s19
      %p290 = scmp.lt.s32.totalorder %s19, 5
      %p291 = pnand %p289, %p290
      %p292 = pneg %p291
      // Predicated region
      $region67: #{tpu_custom_call.1} parent=5 // pred_check
        _
      $region68: #{tpu_custom_call.1} parent=5 // pred_check_branch
        %294 = sbr.rel (%p291) target = $region70
      $region69: #{tpu_custom_call.1} parent=5 // pred_region
        %s295 = ssub.s32 %s19, 1
        %s296 = sand.u32 %s46, 1
        %s297 = sand.u32 %s46, 1
        %s298 = smul.addr %s297, 32
        %s299 = scalar_lea.vmem [#allocation2], %s298
        // Predicated region
        $region71: #{tpu_custom_call.1} parent=69 // pred_check
          %p300 = pneg %p59
        $region72: #{tpu_custom_call.1} parent=69 // pred_check_branch
          %302 = sbr.rel (%p300) target = $region74
        $region73: #{tpu_custom_call.1} parent=69 // pred_region
          _
        $region74: #{tpu_custom_call.1} parent=69 // pred_fallthru
          _
        %s303 = sand.u32 %s46, 1
        %s304 = sand.u32 %s46, 1
        %s305 = smul.addr %s304, 32
        %s306 = scalar_lea.vmem [#allocation2], %s305
        %p307 = pneg %p59
        %p308 = pneg %p56
        %p309 = pneg %p80
        %p310 = pneg %p77
        %p311 = pneg %p101
        %p312 = pneg %p98
        %p313 = pneg %p122
        %p314 = pneg %p119
        %p315 = pneg %p150
        %p316 = pneg %p147
        %s317 = sand.u32 %s137, 1
        %s318 = scalar_lea.sflag [#allocation4], %s317
        %s319 = sand.u32 %s137, 1
        %s320 = smul.addr %s319, 32
        %s321 = scalar_lea.vmem [#allocation3], %s320
        %p322 = pneg %p178
        %p323 = pneg %p175
        %s324 = sand.u32 %s165, 1
        %s325 = scalar_lea.sflag [#allocation6], %s324
        %s326 = sand.u32 %s165, 1
        %s327 = scalar_lea.vmem [#allocation5], %s326
        %p328 = pneg %p206
        %p329 = pneg %p203
        %p330 = scmp.lt.s32.totalorder %s28, 1
        %s331 = scalar_select %p330, %s28, 1
        %p332 = scmp.lt.s32.totalorder %s29, 1
        %s333 = scalar_select %p332, %s29, 1
        %s334 = smul.addr %s331, 2
        %s335 = sadd.s32 %s333, %s334
        %s336 = scalar_lea.vmem %s6, %s335
        %p337 = scmp.lt.s32.totalorder %s28, 1
        %s338 = scalar_select %p337, %s28, 1
        %p339 = scmp.lt.s32.totalorder %s29, 1
        %s340 = scalar_select %p339, %s29, 1
        %s341 = smul.addr %s338, 2
        %s342 = sadd.s32 %s340, %s341
        %s343 = scalar_lea.vmem %s6, %s342
        %v344 = vld [vmem:[%s299] sm:$0xff]
        %v345 = vld [vmem:[%s299 + $0x8] sm:$0xff]
        %v346 = vld [vmem:[%s299 + $0x10] sm:$0xff]
        %v347 = vld [vmem:[%s299 + $0x18] sm:$0xff]
        %v348 = vld [vmem:[%s1] sm:$0xff]
        %v349 = vld [vmem:[%s1 + $0x8] sm:$0xff]
        %v350 = vld [vmem:[%s1 + $0x10] sm:$0xff]
        %v351 = vld [vmem:[%s1 + $0x18] sm:$0xff]
        %v352 = vld [vmem:[%s1 + $0x20] sm:$0xff]
        %v353 = vld [vmem:[%s1 + $0x28] sm:$0xff]
        %v354 = vld [vmem:[%s1 + $0x30] sm:$0xff]
        %v355 = vld [vmem:[%s1 + $0x38] sm:$0xff]
        %v356 = vld [vmem:[%s3] sm:$0xff]
        %v357 = vld [vmem:[%s3 + $0x8] sm:$0xff]
        %v358 = vld [vmem:[%s3 + $0x10] sm:$0xff]
        %v359 = vld [vmem:[%s3 + $0x18] sm:$0xff]
        %v360 = vld [vmem:[%s3 + $0x20] sm:$0xff]
        %v361 = vld [vmem:[%s3 + $0x28] sm:$0xff]
        %v362 = vld [vmem:[%s3 + $0x30] sm:$0xff]
        %v363 = vld [vmem:[%s3 + $0x38] sm:$0xff]
        %vm364 = vcmask 261120
        %v366 = vsel %vm364, %v348, 0
        %v369 = vsel %vm364, %v349, 0
        %v372 = vsel %vm364, %v350, 0
        %v375 = vsel %vm364, %v351, 0
        %v378 = vsel %vm364, %v352, 0
        %v381 = vsel %vm364, %v353, 0
        %v384 = vsel %vm364, %v354, 0
        %v387 = vsel %vm364, %v355, 0
        %389 = vmatprep.subr.mxu0 0.0
        %390 = vmatpush1.msra.mxu0 %v344
        %391 = vmatprep.subr.mxu0 0.0
        %392 = vmatpush1.msra.mxu0 %v345
        %393 = vmatprep.subr.mxu0 0.0
        %394 = vmatpush1.msra.mxu0 %v346
        %395 = vmatprep.subr.mxu0 0.0
        %396 = vmatpush1.msra.mxu0 %v347
        %397 = vmatprep.subr.mxu0 0.0
        %398 = vmatpush1.msra.mxu0 0.0
        %399 = vmatprep.subr.mxu0 0.0
        %400 = vmatpush1.msra.mxu0 0.0
        %401 = vmatprep.subr.mxu0 0.0
        %402 = vmatpush1.msra.mxu0 0.0
        %403 = vmatprep.subr.mxu0 0.0
        %404 = vmatpush1.msra.mxu0 0.0
        %405 = vmatprep.subr.mxu0 0.0
        %406 = vmatpush1.msra.mxu0 0.0
        %407 = vmatprep.subr.mxu0 0.0
        %408 = vmatpush1.msra.mxu0 0.0
        %409 = vmatprep.subr.mxu0 0.0
        %410 = vmatpush1.msra.mxu0 0.0
        %411 = vmatprep.subr.mxu0 0.0
        %412 = vmatpush1.msra.mxu0 0.0
        %413 = vmatprep.subr.mxu0 0.0
        %414 = vmatpush1.msra.mxu0 0.0
        %415 = vmatprep.subr.mxu0 0.0
        %416 = vmatpush1.msra.mxu0 0.0
        %417 = vmatprep.subr.mxu0 0.0
        %418 = vmatpush1.msra.mxu0 0.0
        %419 = vmatprep.subr.mxu0 0.0
        %420 = vmatpush1.msra.mxu0 0.0
        %421 = vmatprep.subr.mxu0 0.0
        %422 = vmatpush1.msra.mxu0 0.0
        %423 = vmatprep.subr.mxu0 0.0
        %424 = vmatpush1.msra.mxu0 0.0
        %425 = vmatprep.subr.mxu0 0.0
        %426 = vmatpush1.msra.mxu0 0.0
        %427 = vmatprep.subr.mxu0 0.0
        %428 = vmatpush1.msra.mxu0 0.0
        %429 = vmatprep.subr.mxu0 0.0
        %430 = vmatpush1.msra.mxu0 0.0
        %431 = vmatprep.subr.mxu0 0.0
        %432 = vmatpush1.msra.mxu0 0.0
        %433 = vmatprep.subr.mxu0 0.0
        %434 = vmatpush1.msra.mxu0 0.0
        %435 = vmatprep.subr.mxu0 0.0
        %436 = vmatpush1.msra.mxu0 0.0
        %437 = vmatprep.subr.mxu0 0.0
        %438 = vmatpush1.msra.mxu0 0.0
        %439 = vmatprep.subr.mxu0 0.0
        %440 = vmatpush1.msra.mxu0 0.0
        %441 = vmatprep.subr.mxu0 0.0
        %442 = vmatpush1.msra.mxu0 0.0
        %443 = vmatprep.subr.mxu0 0.0
        %444 = vmatpush1.msra.mxu0 0.0
        %445 = vmatprep.subr.mxu0 0.0
        %446 = vmatpush1.msra.mxu0 0.0
        %447 = vmatprep.subr.mxu0 0.0
        %448 = vmatpush1.msra.mxu0 0.0
        %449 = vmatprep.subr.mxu0 0.0
        %450 = vmatpush1.msra.mxu0 0.0
        %451 = vmatprep.subr.mxu0 0.0
        %452 = vmatpush1.msra.mxu0 0.0
        %453 = vmatprep.mubr.f32.mxu0 0.0
        %454 = vmatmul.mubr.f32.gmra.mrb[0].mxu0 %v366
        %v455 = vpop.f32.mrb[0].mxu0
        %v456 = vadd.f32 0.0, %v455
        %v457 = vpop.f32.mrb[0].mxu0
        %458 = vmatprep.mubr.f32.mxu0 0.0
        %459 = vmatmul.mubr.f32.gmra.mrb[0].mxu0 %v369
        %v460 = vpop.f32.mrb[0].mxu0
        %v461 = vadd.f32 0.0, %v460
        %v462 = vpop.f32.mrb[0].mxu0
        %463 = vmatprep.mubr.f32.mxu0 0.0
        %464 = vmatmul.mubr.f32.gmra.mrb[0].mxu0 %v372
        %v465 = vpop.f32.mrb[0].mxu0
        %v466 = vadd.f32 0.0, %v465
        %v467 = vpop.f32.mrb[0].mxu0
        %468 = vmatprep.mubr.f32.mxu0 0.0
        %469 = vmatmul.mubr.f32.gmra.mrb[0].mxu0 %v375
        %v470 = vpop.f32.mrb[0].mxu0
        %v471 = vadd.f32 0.0, %v470
        %v472 = vpop.f32.mrb[0].mxu0
        %473 = vmatprep.mubr.f32.mxu0 0.0
        %474 = vmatmul.mubr.f32.gmra.mrb[0].mxu0 %v378
        %v475 = vpop.f32.mrb[0].mxu0
        %v476 = vadd.f32 0.0, %v475
        %v477 = vpop.f32.mrb[0].mxu0
        %478 = vmatprep.mubr.f32.mxu0 0.0
        %479 = vmatmul.mubr.f32.gmra.mrb[0].mxu0 %v381
        %v480 = vpop.f32.mrb[0].mxu0
        %v481 = vadd.f32 0.0, %v480
        %v482 = vpop.f32.mrb[0].mxu0
        %483 = vmatprep.mubr.f32.mxu0 0.0
        %484 = vmatmul.mubr.f32.gmra.mrb[0].mxu0 %v384
        %v485 = vpop.f32.mrb[0].mxu0
        %v486 = vadd.f32 0.0, %v485
        %v487 = vpop.f32.mrb[0].mxu0
        %488 = vmatprep.mubr.f32.mxu0 0.0
        %489 = vmatmul.mubr.f32.gmra.mrb[0].mxu0 %v387
        %v490 = vpop.f32.mrb[0].mxu0
        %v491 = vadd.f32 0.0, %v490
        %v492 = vpop.f32.mrb[0].mxu0
        %493 = vdwg.mxu0
        %v494 = vmul.f32 %v456, 2.0
        %v495 = vmul.f32 %v461, 2.0
        %v496 = vmul.f32 %v466, 2.0
        %v497 = vmul.f32 %v471, 2.0
        %v498 = vmul.f32 %v476, 2.0
        %v499 = vmul.f32 %v481, 2.0
        %v500 = vmul.f32 %v486, 2.0
        %v501 = vmul.f32 %v491, 2.0
        %503 = vset.pattern.permute.xlu0 0
        %504 = vperm.xlu0 %503, %v356
        %v505 = vpop.permute.xlu0 %504
        %508 = vset.pattern.permute.xlu0 0
        %509 = vperm.xlu0 %508, %v357
        %v510 = vpop.permute.xlu0 %509
        %513 = vset.pattern.permute.xlu0 0
        %514 = vperm.xlu0 %513, %v358
        %v515 = vpop.permute.xlu0 %514
        %518 = vset.pattern.permute.xlu0 0
        %519 = vperm.xlu0 %518, %v359
        %v520 = vpop.permute.xlu0 %519
        %523 = vset.pattern.permute.xlu0 0
        %524 = vperm.xlu0 %523, %v360
        %v525 = vpop.permute.xlu0 %524
        %528 = vset.pattern.permute.xlu0 0
        %529 = vperm.xlu0 %528, %v361
        %v530 = vpop.permute.xlu0 %529
        %533 = vset.pattern.permute.xlu0 0
        %534 = vperm.xlu0 %533, %v362
        %v535 = vpop.permute.xlu0 %534
        %538 = vset.pattern.permute.xlu0 0
        %539 = vperm.xlu0 %538, %v363
        %v540 = vpop.permute.xlu0 %539
        %v542 = vsub.f32 %v505, %v494
        %v543 = vsub.f32 %v510, %v495
        %v544 = vsub.f32 %v515, %v496
        %v545 = vsub.f32 %v520, %v497
        %v546 = vsub.f32 %v525, %v498
        %v547 = vsub.f32 %v530, %v499
        %v548 = vsub.f32 %v535, %v500
        %v549 = vsub.f32 %v540, %v501
        %v550 = vlaneseq
        %v551 = vshrl.u32 %v550, 7
        %v552 = vadd.s32 %v551, 8
        %v553 = vadd.s32 %v551, 16
        %v554 = vadd.s32 %v551, 24
        %v555 = vadd.s32 %v551, 32
        %v556 = vadd.s32 %v551, 40
        %v557 = vadd.s32 %v551, 48
        %v558 = vadd.s32 %v551, 56
        %v559 = vmin.f32 %v542, %v546
        %v560 = vmin.f32 %v543, %v547
        %v561 = vmin.f32 %v544, %v548
        %v562 = vmin.f32 %v545, %v549
        %v563 = vmin.f32 %v559, %v560
        %v564 = vmin.f32 %v561, %v562
        %v565 = vmin.f32 %v563, %v564
        %v566 = vrot.slane %v565, 4
        %v567 = vmin.f32 %v565, %v566
        %v568 = vrot.slane %v567, 2
        %v569 = vmin.f32 %v567, %v568
        %v570 = vrot.slane %v569, 1
        %v571 = vmin.f32 %v569, %v570
        %vm572 = vcmp.eq.f32.partialorder %v542, %v571
        %vm573 = vcmp.eq.f32.partialorder %v543, %v571
        %vm574 = vcmp.eq.f32.partialorder %v544, %v571
        %vm575 = vcmp.eq.f32.partialorder %v545, %v571
        %vm576 = vcmp.eq.f32.partialorder %v546, %v571
        %vm577 = vcmp.eq.f32.partialorder %v547, %v571
        %vm578 = vcmp.eq.f32.partialorder %v548, %v571
        %vm579 = vcmp.eq.f32.partialorder %v549, %v571
        %v580 = vsel %vm572, %v551, 64
        %v581 = vsel %vm573, %v552, 64
        %v582 = vsel %vm574, %v553, 64
        %v583 = vsel %vm575, %v554, 64
        %v584 = vsel %vm576, %v555, 64
        %v585 = vsel %vm577, %v556, 64
        %v586 = vsel %vm578, %v557, 64
        %v587 = vsel %vm579, %v558, 64
        %vm588 = vcmp.lt.s32.totalorder %v580, %v584
        %v589 = vsel %vm588, %v580, %v584
        %vm590 = vcmp.lt.s32.totalorder %v581, %v585
        %v591 = vsel %vm590, %v581, %v585
        %vm592 = vcmp.lt.s32.totalorder %v582, %v586
        %v593 = vsel %vm592, %v582, %v586
        %vm594 = vcmp.lt.s32.totalorder %v583, %v587
        %v595 = vsel %vm594, %v583, %v587
        %vm596 = vcmp.lt.s32.totalorder %v589, %v591
        %v597 = vsel %vm596, %v589, %v591
        %vm598 = vcmp.lt.s32.totalorder %v593, %v595
        %v599 = vsel %vm598, %v593, %v595
        %vm600 = vcmp.lt.s32.totalorder %v597, %v599
        %v601 = vsel %vm600, %v597, %v599
        %v602 = vrot.slane %v601, 4
        %vm603 = vcmp.lt.s32.totalorder %v601, %v602
        %v604 = vsel %vm603, %v601, %v602
        %v605 = vrot.slane %v604, 2
        %vm606 = vcmp.lt.s32.totalorder %v604, %v605
        %v607 = vsel %vm606, %v604, %v605
        %v608 = vrot.slane %v607, 1
        %vm609 = vcmp.lt.s32.totalorder %v607, %v608
        %v610 = vsel %vm609, %v607, %v608
        %vm611 = vcmp.lt.f32.partialorder %v571, inf
        %v612 = vsel %vm611, %v610, 0
        %v613 = vld [vmem:[%s2] sm:$0xff]
        %v614 = vld [vmem:[%s2 + $0x8] sm:$0xff]
        %v615 = vld [vmem:[%s2 + $0x10] sm:$0xff]
        %v616 = vld [vmem:[%s2 + $0x18] sm:$0xff]
        %vm617 = vcmp.eq.s32.totalorder %v551, %v612
        %vm618 = vcmp.eq.s32.totalorder %v552, %v612
        %vm619 = vcmp.eq.s32.totalorder %v553, %v612
        %vm620 = vcmp.eq.s32.totalorder %v554, %v612
        %vm621 = vcmp.eq.s32.totalorder %v555, %v612
        %vm622 = vcmp.eq.s32.totalorder %v556, %v612
        %vm623 = vcmp.eq.s32.totalorder %v557, %v612
        %vm624 = vcmp.eq.s32.totalorder %v558, %v612
        %v625 = vsel %vm617, 1, 0
        %v626 = vsel %vm618, 1, 0
        %v627 = vsel %vm619, 1, 0
        %v628 = vsel %vm620, 1, 0
        %v629 = vsel %vm621, 1, 0
        %v630 = vsel %vm622, 1, 0
        %v631 = vsel %vm623, 1, 0
        %v632 = vsel %vm624, 1, 0
        %v633 = vcvt.s32.f32 %v625
        %v634 = vcvt.s32.f32 %v626
        %v635 = vcvt.s32.f32 %v627
        %v636 = vcvt.s32.f32 %v628
        %v637 = vcvt.s32.f32 %v629
        %v638 = vcvt.s32.f32 %v630
        %v639 = vcvt.s32.f32 %v631
        %v640 = vcvt.s32.f32 %v632
        %vm641 = vcmask 523264
        %v643 = vsel %vm641, %v613, 0
        %v646 = vsel %vm641, %v614, 0
        %v649 = vsel %vm641, %v615, 0
        %v652 = vsel %vm641, %v616, 0
        %654 = vmatprep.subr.mxu0 0.0
        %655 = vmatpush1.msra.mxu0 %v633
        %656 = vmatprep.subr.mxu0 0.0
        %657 = vmatpush1.msra.mxu0 %v634
        %658 = vmatprep.subr.mxu0 0.0
        %659 = vmatpush1.msra.mxu0 %v635
        %660 = vmatprep.subr.mxu0 0.0
        %661 = vmatpush1.msra.mxu0 %v636
        %662 = vmatprep.subr.mxu0 0.0
        %663 = vmatpush1.msra.mxu0 %v637
        %664 = vmatprep.subr.mxu0 0.0
        %665 = vmatpush1.msra.mxu0 %v638
        %666 = vmatprep.subr.mxu0 0.0
        %667 = vmatpush1.msra.mxu0 %v639
        %668 = vmatprep.subr.mxu0 0.0
        %669 = vmatpush1.msra.mxu0 %v640
        %670 = vmatprep.subr.mxu0 0.0
        %671 = vmatpush1.msra.mxu0 0.0
        %672 = vmatprep.subr.mxu0 0.0
        %673 = vmatpush1.msra.mxu0 0.0
        %674 = vmatprep.subr.mxu0 0.0
        %675 = vmatpush1.msra.mxu0 0.0
        %676 = vmatprep.subr.mxu0 0.0
        %677 = vmatpush1.msra.mxu0 0.0
        %678 = vmatprep.subr.mxu0 0.0
        %679 = vmatpush1.msra.mxu0 0.0
        %680 = vmatprep.subr.mxu0 0.0
        %681 = vmatpush1.msra.mxu0 0.0
        %682 = vmatprep.subr.mxu0 0.0
        %683 = vmatpush1.msra.mxu0 0.0
        %684 = vmatprep.subr.mxu0 0.0
        %685 = vmatpush1.msra.mxu0 0.0
        %686 = vmatprep.subr.mxu0 0.0
        %687 = vmatpush1.msra.mxu0 0.0
        %688 = vmatprep.subr.mxu0 0.0
        %689 = vmatpush1.msra.mxu0 0.0
        %690 = vmatprep.subr.mxu0 0.0
        %691 = vmatpush1.msra.mxu0 0.0
        %692 = vmatprep.subr.mxu0 0.0
        %693 = vmatpush1.msra.mxu0 0.0
        %694 = vmatprep.subr.mxu0 0.0
        %695 = vmatpush1.msra.mxu0 0.0
        %696 = vmatprep.subr.mxu0 0.0
        %697 = vmatpush1.msra.mxu0 0.0
        %698 = vmatprep.subr.mxu0 0.0
        %699 = vmatpush1.msra.mxu0 0.0
        %700 = vmatprep.subr.mxu0 0.0
        %701 = vmatpush1.msra.mxu0 0.0
        %702 = vmatprep.subr.mxu0 0.0
        %703 = vmatpush1.msra.mxu0 0.0
        %704 = vmatprep.subr.mxu0 0.0
        %705 = vmatpush1.msra.mxu0 0.0
        %706 = vmatprep.subr.mxu0 0.0
        %707 = vmatpush1.msra.mxu0 0.0
        %708 = vmatprep.subr.mxu0 0.0
        %709 = vmatpush1.msra.mxu0 0.0
        %710 = vmatprep.subr.mxu0 0.0
        %711 = vmatpush1.msra.mxu0 0.0
        %712 = vmatprep.subr.mxu0 0.0
        %713 = vmatpush1.msra.mxu0 0.0
        %714 = vmatprep.subr.mxu0 0.0
        %715 = vmatpush1.msra.mxu0 0.0
        %716 = vmatprep.subr.mxu0 0.0
        %717 = vmatpush1.msra.mxu0 0.0
        %718 = vmatprep.mubr.f32.mxu0 0.0
        %719 = vmatmul.mubr.f32.gmra.mrb[0].mxu0 %v643
        %v720 = vpop.f32.mrb[0].mxu0
        %v721 = vadd.f32 0.0, %v720
        %v722 = vpop.f32.mrb[0].mxu0
        %723 = vmatprep.mubr.f32.mxu0 0.0
        %724 = vmatmul.mubr.f32.gmra.mrb[0].mxu0 %v646
        %v725 = vpop.f32.mrb[0].mxu0
        %v726 = vadd.f32 0.0, %v725
        %v727 = vpop.f32.mrb[0].mxu0
        %728 = vmatprep.mubr.f32.mxu0 0.0
        %729 = vmatmul.mubr.f32.gmra.mrb[0].mxu0 %v649
        %v730 = vpop.f32.mrb[0].mxu0
        %v731 = vadd.f32 0.0, %v730
        %v732 = vpop.f32.mrb[0].mxu0
        %733 = vmatprep.mubr.f32.mxu0 0.0
        %734 = vmatmul.mubr.f32.gmra.mrb[0].mxu0 %v652
        %v735 = vpop.f32.mrb[0].mxu0
        %v736 = vadd.f32 0.0, %v735
        %v737 = vpop.f32.mrb[0].mxu0
        %738 = vdwg.mxu0
        %s739 = smul.u32 %s29, 128
        %v740 = vlaneseq
        %v741 = vand.u32 %v740, 127
        %v742 = vstv %s739
        %v743 = vadd.s32 %v742, %v741
        %vm744 = vcmp.lt.s32.totalorder %v743, 256
        %745 = vst [vmem:[%s321] sm:$0xff] %v721
        %746 = vst [vmem:[%s321 + $0x8] sm:$0xff] %v726
        %747 = vst [vmem:[%s321 + $0x10] sm:$0xff] %v731
        %748 = vst [vmem:[%s321 + $0x18] sm:$0xff] %v736
        %749 = vst [vmem:[%s327] sm:$0x1] %v612
        %v750 = vsub.f32 %v721, %v344
        %v751 = vsub.f32 %v726, %v345
        %v752 = vsub.f32 %v731, %v346
        %v753 = vsub.f32 %v736, %v347
        %v754 = vsel %vm744, 1, 0
        %vm755 = vcmp.eq.s32.totalorder %v754, 1
        %v756 = vsel %vm755, %v750, 0.0
        %v757 = vsel %vm755, %v751, 0.0
        %v758 = vsel %vm755, %v752, 0.0
        %v759 = vsel %vm755, %v753, 0.0
        %v760 = vmul.f32 %v756, %v756
        %v761 = vmul.f32 %v757, %v757
        %v762 = vmul.f32 %v758, %v758
        %v763 = vmul.f32 %v759, %v759
        %v764 = vadd.f32 %v760, %v761
        %v765 = vadd.f32 %v764, %v762
        %v766 = vadd.f32 %v765, %v763
        %767 = vadd.xlane.f32.xlu0 %v766
        %v768 = vpop.xlane.xlu0 %767
        %v769 = vrot.slane %v768, 4
        %v770 = vadd.f32 %v768, %v769
        %v771 = vrot.slane %v770, 2
        %v772 = vadd.f32 %v770, %v771
        %v773 = vrot.slane %v772, 1
        %v774 = vadd.f32 %v772, %v773
        %s775 = vtos %v774
        %v776 = vstv %s775
        %vm777 = vcmask 0
        %778 = vst.msk [vmem:[%s343] sm:$0x1] %vm777, %v776
        %s779 = sand.u32 %s137, 1
        %s780 = scalar_lea.sflag [#allocation4], %s779
        %s781 = sand.u32 %s137, 1
        %s782 = smul.addr %s781, 32
        %s783 = scalar_lea.vmem [#allocation3], %s782
        %s784 = sand.u32 %s165, 1
        %s785 = scalar_lea.sflag [#allocation6], %s784
        %s786 = sand.u32 %s165, 1
        %s787 = scalar_lea.vmem [#allocation5], %s786
        %p788 = scmp.lt.s32.totalorder %s28, 1
        %s789 = scalar_select %p788, %s28, 1
        %p790 = scmp.lt.s32.totalorder %s29, 1
        %s791 = scalar_select %p790, %s29, 1
        %s792 = smul.addr %s789, 2
        %s793 = sadd.s32 %s791, %s792
        %s794 = scalar_lea.vmem %s6, %s793
        // Predicated region
        $region75: #{tpu_custom_call.1} parent=69 // pred_check
          %p795 = pneg %p147
        $region76: #{tpu_custom_call.1} parent=69 // pred_check_branch
          %797 = sbr.rel (%p795) target = $region78
        $region77: #{tpu_custom_call.1} parent=69 // pred_region
          %s799 = ssub.s32 512, 512
          %800 = vsyncadd %s780, %s799
          %s801 = smul.addr %s28, 8
          %s802 = sadd.s32 %s29, %s801
          %s803 = smul.addr %s802, 128
          %s804 = scalar_lea.hbm %s4, %s803
          %s805 = sshll.u32 %s783, 4
          %s806 = int_to_ptr.vmem [resolvable:$true] %s805
          %811 = dma.vmem_to_hbm [thread:$0]  %s806, 512, %s804, %s780, 128, 256, 8
        $region78: #{tpu_custom_call.1} parent=69 // pred_fallthru
          _
        // Predicated region
        $region79: #{tpu_custom_call.1} parent=69 // pred_check
          %p812 = pneg %p175
        $region80: #{tpu_custom_call.1} parent=69 // pred_check_branch
          %814 = sbr.rel (%p812) target = $region82
        $region81: #{tpu_custom_call.1} parent=69 // pred_region
          %s816 = ssub.s32 16, 16
          %817 = vsyncadd %s785, %s816
          %s818 = smul.addr %s28, 2
          %s819 = sadd.s32 %s29, %s818
          %s820 = smul.addr %s819, 16
          %s821 = scalar_lea.hbm %s5, %s820
          %s823 = sshll.u32 %s787, 4
          %s824 = int_to_ptr.vmem [resolvable:$true] %s823
          %826 = dma.vmem_to_hbm [thread:$0]  %s824, 16, %s821, %s785
        $region82: #{tpu_custom_call.1} parent=69 // pred_fallthru
          _
        // Predicated region
        $region83: #{tpu_custom_call.1} parent=69 // pred_check
          %p827 = pneg %p203
        $region84: #{tpu_custom_call.1} parent=69 // pred_check_branch
          %829 = sbr.rel (%p827) target = $region86
        $region85: #{tpu_custom_call.1} parent=69 // pred_region
          _
        $region86: #{tpu_custom_call.1} parent=69 // pred_fallthru
          _
      $region70: #{tpu_custom_call.1} parent=5 // pred_fallthru
        _
      %p830 = scmp.le.s32.totalorder 2, %s19
      // Predicated region
      $region87: #{tpu_custom_call.1} parent=5 // pred_check
        %p831 = pneg %p830
      $region88: #{tpu_custom_call.1} parent=5 // pred_check_branch
        %833 = sbr.rel (%p831) target = $region90
      $region89: #{tpu_custom_call.1} parent=5 // pred_region
        %s834 = ssub.s32 %s19, 2
        // Predicated region
        $region91: #{tpu_custom_call.1} parent=89 // pred_check
          %p835 = pneg %p153
        $region92: #{tpu_custom_call.1} parent=89 // pred_check_branch
          %837 = sbr.rel (%p835) target = $region94
        $region93: #{tpu_custom_call.1} parent=89 // pred_region
          %s838 = sand.u32 %s138, 1
          %s839 = scalar_lea.sflag [#allocation4], %s838
          %s840 = sand.u32 %s138, 1
          %s841 = smul.addr %s840, 32
          %s842 = scalar_lea.vmem [#allocation3], %s841
          %843 = dma.done %s839, 512
        $region94: #{tpu_custom_call.1} parent=89 // pred_fallthru
          _
        // Predicated region
        $region95: #{tpu_custom_call.1} parent=89 // pred_check
          %p844 = pneg %p181
        $region96: #{tpu_custom_call.1} parent=89 // pred_check_branch
          %846 = sbr.rel (%p844) target = $region98
        $region97: #{tpu_custom_call.1} parent=89 // pred_region
          %s847 = sand.u32 %s166, 1
          %s848 = scalar_lea.sflag [#allocation6], %s847
          %s849 = sand.u32 %s166, 1
          %s850 = scalar_lea.vmem [#allocation5], %s849
          %851 = dma.done %s848, 16
        $region98: #{tpu_custom_call.1} parent=89 // pred_fallthru
          _
        // Predicated region
        $region99: #{tpu_custom_call.1} parent=89 // pred_check
          %p852 = pneg %p209
        $region100: #{tpu_custom_call.1} parent=89 // pred_check_branch
          %854 = sbr.rel (%p852) target = $region102
        $region101: #{tpu_custom_call.1} parent=89 // pred_region
          %p855 = scmp.lt.s32.totalorder %s30, 1
          %s856 = scalar_select %p855, %s30, 1
          %p857 = scmp.lt.s32.totalorder %s31, 1
          %s858 = scalar_select %p857, %s31, 1
          %s859 = smul.addr %s856, 2
          %s860 = sadd.s32 %s858, %s859
          %s861 = scalar_lea.vmem %s6, %s860
        $region102: #{tpu_custom_call.1} parent=89 // pred_fallthru
          _
      $region90: #{tpu_custom_call.1} parent=5 // pred_fallthru
        _
    $region6: #{tpu_custom_call.1} parent=1 // loop_footer
      %s23 = sadd.s32 1, %s19
    $region7: #{tpu_custom_call.1} parent=1 // loop_footer_branch
      %18 = sbr.rel target = $region3
    $region8: #{tpu_custom_call.1} parent=1 // loop_exit
      _
    %862 = vsyncpa [#allocation4], 1
    %s863 = scalar_lea.sflag [#allocation4], 1
    %864 = vsyncpa %s863, 1
    %865 = vsyncpa [#allocation6], 1
    %s866 = scalar_lea.sflag [#allocation6], 1
    %867 = vsyncpa %s866, 1

</llo_original>
